<compile_context>
chip_gen: v7x
topology: tpu7x:2x2x1
jax: 0.10.0
libtpu: 0.0.40
codegen_flags: <defaults>
</compile_context>

<pallas_src>
import functools

import jax
import jax.numpy as jnp
from jax.experimental import pallas as pl
from jax.experimental.pallas import tpu as pltpu


def _gated_logits_kernel(x_ref, wvu_ref, bvu_ref, wwt_ref, bw_ref, out_ref, *,
                         d_pad, compute_dtype):
    x = x_ref[...]                                             # (TN, L)
    if compute_dtype is not None and x.dtype != compute_dtype:
        # bf16 MXU operands, f32 accumulation (cast is cheap VPU work, hidden
        # under the x-tile DMA).  wvu is already stored in compute_dtype.
        x = x.astype(compute_dtype)

    # Fused attention_V / attention_U linear layers: one MXU pass over (L, 2D).
    h = (jnp.dot(x, wvu_ref[...], preferred_element_type=jnp.float32)
         + bvu_ref[...])                                       # (TN, 2*d_pad) f32

    # d_pad % 128 == 0, so the column split is on a lane-tile boundary (free).
    a_v = jnp.tanh(h[:, :d_pad])                               # (TN, d_pad)
    a_u = jax.nn.sigmoid(h[:, d_pad:])                         # (TN, d_pad)
    gated = a_v * a_u                                          # (TN, d_pad) f32

    # attention_weights, emitted directly in lane-dense (K, TN) layout:
    #   logits[k, n] = sum_d wwt[k, d] * gated[n, d]
    # K is tiny (default 1); this dot is off the HBM-bound critical path.
    logits = jax.lax.dot_general(
        wwt_ref[...], gated,
        dimension_numbers=(((1,), (1,)), ((), ())),
        preferred_element_type=jnp.float32)                    # (K, TN)

    out_ref[...] = logits + bw_ref[...]                        # bw is (K, 1)


def _round_up(v, m):
    return ((v + m - 1) // m) * m


@functools.partial(jax.jit,
                   static_argnames=("isNorm", "block_n", "compute_dtype"))
def attention_gated(x, wv, bv, wu, bu, ww, bw, isNorm=True, block_n=4096,
                    compute_dtype=jnp.bfloat16):
    """Gated-attention forward (DTFD-MIL Attention_Gated).

    x: (N, L) instance features; wv/wu: (L, D); bv/bu: (1, D); ww: (D, K);
    bw: (1, K).  Returns (K, N) attention, softmax-normalized over N if isNorm
    (matches torch.transpose(A, 1, 0) + F.softmax(A, dim=1)).

    compute_dtype: dtype used for the MXU operands of the big matmul
    (accumulation is always f32).  None -> use x's dtype unchanged.
    """
    N, L = x.shape
    D = wv.shape[1]
    K = ww.shape[1]

    # --- Host-side weight prep (tiny arrays, done once per call) -------------
    # Zero-pad D up to a lane-tile multiple so the fused column split inside
    # the kernel never forces a relayout; padded wwt columns are zero so the
    # padded lanes never contribute to the logits.
    d_pad = _round_up(D, 128)
    if d_pad != D:
        pad = d_pad - D
        wv = jnp.pad(wv, ((0, 0), (0, pad)))
        wu = jnp.pad(wu, ((0, 0), (0, pad)))
        bv = jnp.pad(bv.reshape(1, D), ((0, 0), (0, pad)))
        bu = jnp.pad(bu.reshape(1, D), ((0, 0), (0, pad)))
        ww = jnp.pad(ww, ((0, pad), (0, 0)))

    wvu = jnp.concatenate([wv, wu], axis=1)                              # (L, 2*d_pad)
    bvu = jnp.concatenate(
        [bv.reshape(1, d_pad), bu.reshape(1, d_pad)], axis=1
    ).astype(jnp.float32)                                                # (1, 2*d_pad)
    wwt = ww.T.astype(jnp.float32)                                       # (K, d_pad)
    bw_k1 = bw.reshape(K, 1).astype(jnp.float32)                         # (K, 1)

    if compute_dtype is not None:
        wvu = wvu.astype(compute_dtype)   # tiny, VMEM-resident weight

    # --- Tiling ---------------------------------------------------------------
    # Output tile (K, TN) wants TN % 128 == 0 (lane-dense, unmasked stores).
    tn = _round_up(min(block_n, N), 128)
    if N >= 256:
        # Keep the "parallel" grid axis length >= 2 (megacore / v7x 2 TCs).
        tn = min(tn, _round_up(-(-N // 2), 128))
    grid = (pl.cdiv(N, tn),)
    n_pad = grid[0] * tn   # padded OUTPUT columns only; x itself is NOT padded.
    # The last x block may read past the end of x (unspecified/garbage rows);
    # the corresponding logit columns >= N are sliced off below, before any
    # reduction over N, so they never affect the result.

    flops = 2 * N * L * (2 * d_pad) + 2 * N * d_pad * K + N * d_pad
    bytes_accessed = (x.size * x.dtype.itemsize
                      + wvu.size * wvu.dtype.itemsize
                      + (bvu.size + wwt.size + bw_k1.size) * 4
                      + K * n_pad * 4)

    logits_padded = pl.pallas_call(
        functools.partial(_gated_logits_kernel, d_pad=d_pad,
                          compute_dtype=compute_dtype),
        out_shape=jax.ShapeDtypeStruct((K, n_pad), jnp.float32),
        grid=grid,
        in_specs=[
            pl.BlockSpec((tn, L), lambda i: (i, 0)),            # streamed x tile
            pl.BlockSpec((L, 2 * d_pad), lambda i: (0, 0)),     # resident fused W_vu
            pl.BlockSpec((1, 2 * d_pad), lambda i: (0, 0)),     # resident fused bias
            pl.BlockSpec((K, d_pad), lambda i: (0, 0)),         # resident ww^T
            pl.BlockSpec((K, 1), lambda i: (0, 0)),             # resident bw
        ],
        out_specs=pl.BlockSpec((K, tn), lambda i: (0, i)),      # lane-dense output
        compiler_params=pltpu.CompilerParams(
            dimension_semantics=("parallel",),
            vmem_limit_bytes=48 * 1024 * 1024),
        cost_estimate=pl.CostEstimate(
            flops=flops,
            transcendentals=2 * N * d_pad,
            bytes_accessed=bytes_accessed),
    )(x, wvu, bvu, wwt, bw_k1)

    logits = logits_padded[:, :N]                               # drop padded columns
    if isNorm:
        # Softmax over the full N axis on the tiny (K, N) logits (plain JAX).
        return jax.nn.softmax(logits, axis=1)
    return logits


def _reference(x, wv, bv, wu, bu, ww, bw, isNorm=True):
    av = jnp.tanh(x @ wv + bv)
    au = jax.nn.sigmoid(x @ wu + bu)
    a = ((av * au) @ ww + bw).T        # (K, N)
    if isNorm:
        a = jax.nn.softmax(a, axis=1)
    return a


def _make_params(key, L, D, K):
    kv, kbv, ku, kbu, kw, kbw = jax.random.split(key, 6)

    def uinit(k, shape, fan_in):
        bound = 1.0 / jnp.sqrt(fan_in)
        return jax.random.uniform(k, shape, jnp.float32, -bound, bound)

    return (uinit(kv, (L, D), L), uinit(kbv, (1, D), L),
            uinit(ku, (L, D), L), uinit(kbu, (1, D), L),
            uinit(kw, (D, K), D), uinit(kbw, (1, K), D))


if __name__ == "__main__":
    key = jax.random.PRNGKey(0)

    # --- Config 1: module defaults L=512, D=128, K=1; N=300 instances
    # (non-multiple of the tile to exercise the partial-last-block path). -----
    N, L, D, K = 300, 512, 128, 1
    kx, kp = jax.random.split(key)
    x = jax.random.normal(kx, (N, L), dtype=jnp.float32)
    params = _make_params(kp, L, D, K)

    # bf16-MXU path (recommended); f32 accumulation -> modest tolerances.
    out = jax.block_until_ready(
        attention_gated(x, *params, isNorm=True, block_n=4096))
    ref = _reference(x, *params, isNorm=True)
    assert out.shape == (K, N), out.shape
    assert jnp.allclose(jnp.sum(out, axis=1), 1.0, atol=1e-4), "rows must sum to 1"
    assert jnp.allclose(out, ref, atol=5e-4, rtol=5e-2), (
        "softmax mismatch (bf16), max abs diff = %g"
        % float(jnp.max(jnp.abs(out - ref))))

    # Full-f32 path for a tight numerical check.
    out32 = jax.block_until_ready(
        attention_gated(x, *params, isNorm=True, block_n=4096,
                        compute_dtype=None))
    assert jnp.allclose(out32, ref, atol=2e-5, rtol=1e-4), (
        "softmax mismatch (f32), max abs diff = %g"
        % float(jnp.max(jnp.abs(out32 - ref))))

    # Non-normalized path (raw attention logits, still (K, N)).
    out_raw = jax.block_until_ready(
        attention_gated(x, *params, isNorm=False, block_n=4096))
    ref_raw = _reference(x, *params, isNorm=False)
    assert jnp.allclose(out_raw, ref_raw, atol=1e-2, rtol=1e-2), (
        "logit mismatch (bf16), max abs diff = %g"
        % float(jnp.max(jnp.abs(out_raw - ref_raw))))

    # --- Config 2: non-lane-aligned D and K > 1 to exercise the D-padding and
    # multi-row-output paths (small shapes). ----------------------------------
    N2, L2, D2, K2 = 200, 256, 96, 2
    kx2, kp2 = jax.random.split(kp)
    x2 = jax.random.normal(kx2, (N2, L2), dtype=jnp.float32)
    params2 = _make_params(kp2, L2, D2, K2)
    out2 = jax.block_until_ready(
        attention_gated(x2, *params2, isNorm=True, block_n=4096))
    ref2 = _reference(x2, *params2, isNorm=True)
    assert out2.shape == (K2, N2), out2.shape
    assert jnp.allclose(out2, ref2, atol=5e-4, rtol=5e-2), (
        "softmax mismatch (D=96,K=2), max abs diff = %g"
        % float(jnp.max(jnp.abs(out2 - ref2))))

    print("KERNEL_OK")
</pallas_src>

<mosaic_0001>
module attributes {stable_mosaic.version = 11 : i64} {
  func.func @_gated_logits_kernel(%arg0: i32, %arg1: memref<256x512xf32, #tpu.memory_space<vmem>>, %arg2: memref<512x256xbf16, #tpu.memory_space<vmem>>, %arg3: memref<1x256xf32, #tpu.memory_space<vmem>>, %arg4: memref<1x128xf32, #tpu.memory_space<vmem>>, %arg5: memref<1x1xf32, #tpu.memory_space<vmem>>, %arg6: memref<1x256xf32, #tpu.memory_space<vmem>>) attributes {dimension_semantics = [#tpu.dimension_semantics<parallel>], iteration_bounds = array<i64: 2>, scalar_prefetch = 0 : i64, scratch_operands = 0 : i64, tpu.core_type = #tpu.core_type<tc>, window_params = [{transform_indices = @transform_0, window_bounds = array<i64: 256, 512>}, {pipeline_mode = #tpu.pipeline_mode<synchronous>, transform_indices = @transform_1, window_bounds = array<i64: 512, 256>}, {pipeline_mode = #tpu.pipeline_mode<synchronous>, transform_indices = @transform_2, window_bounds = array<i64: 1, 256>}, {pipeline_mode = #tpu.pipeline_mode<synchronous>, transform_indices = @transform_3, window_bounds = array<i64: 1, 128>}, {pipeline_mode = #tpu.pipeline_mode<synchronous>, transform_indices = @transform_4, window_bounds = array<i64: 1, 1>}, {transform_indices = @transform_5, window_bounds = array<i64: 1, 256>}]} {
    %c0 = arith.constant 0 : index
    %c0_0 = arith.constant 0 : index
    %0 = vector.load %arg1[%c0, %c0_0] : memref<256x512xf32, #tpu.memory_space<vmem>>, vector<256x512xf32>
    %1 = arith.truncf %0 : vector<256x512xf32> to vector<256x512xbf16>
    %c0_1 = arith.constant 0 : index
    %c0_2 = arith.constant 0 : index
    %2 = vector.load %arg2[%c0_1, %c0_2] : memref<512x256xbf16, #tpu.memory_space<vmem>>, vector<512x256xbf16>
    %cst = arith.constant dense<0.000000e+00> : vector<256x256xf32>
    %3 = tpu.matmul %1, %2, %cst {dimension_numbers = #tpu.dot_dimension_numbers<[1], [0], [0], [1], [0, 0, 1, 1], [], []>} : vector<256x512xbf16>, vector<512x256xbf16>, vector<256x256xf32> -> vector<256x256xf32>
    %c0_3 = arith.constant 0 : index
    %c0_4 = arith.constant 0 : index
    %4 = vector.load %arg3[%c0_3, %c0_4] : memref<1x256xf32, #tpu.memory_space<vmem>>, vector<1x256xf32>
    %5 = vector.broadcast %4 : vector<1x256xf32> to vector<256x256xf32>
    %6 = arith.addf %3, %5 : vector<256x256xf32>
    %7 = vector.extract_strided_slice %6 {offsets = [0, 0], sizes = [256, 128], strides = [1, 1]} : vector<256x256xf32> to vector<256x128xf32>
    %8 = math.tanh %7 : vector<256x128xf32>
    %9 = vector.extract_strided_slice %6 {offsets = [0, 128], sizes = [256, 128], strides = [1, 1]} : vector<256x256xf32> to vector<256x128xf32>
    %10 = arith.negf %9 : vector<256x128xf32>
    %11 = math.exp %10 : vector<256x128xf32>
    %cst_5 = arith.constant 1.000000e+00 : f32
    %12 = vector.broadcast %cst_5 : f32 to vector<256x128xf32>
    %13 = arith.addf %12, %11 : vector<256x128xf32>
    %14 = arith.divf %12, %13 : vector<256x128xf32>
    %15 = arith.mulf %8, %14 : vector<256x128xf32>
    %c0_6 = arith.constant 0 : index
    %c0_7 = arith.constant 0 : index
    %16 = vector.load %arg4[%c0_6, %c0_7] : memref<1x128xf32, #tpu.memory_space<vmem>>, vector<1x128xf32>
    %cst_8 = arith.constant dense<0.000000e+00> : vector<1x256xf32>
    %17 = tpu.matmul %16, %15, %cst_8 {dimension_numbers = #tpu.dot_dimension_numbers<[1], [1], [0], [0], [0, 0, 1, 0], [], []>} : vector<1x128xf32>, vector<256x128xf32>, vector<1x256xf32> -> vector<1x256xf32>
    %c0_9 = arith.constant 0 : index
    %c0_10 = arith.constant 0 : index
    %18 = vector.load %arg5[%c0_9, %c0_10] : memref<1x1xf32, #tpu.memory_space<vmem>>, vector<1x1xf32>
    %19 = vector.broadcast %18 : vector<1x1xf32> to vector<1x256xf32>
    %20 = arith.addf %17, %19 : vector<1x256xf32>
    %c0_11 = arith.constant 0 : index
    %c0_12 = arith.constant 0 : index
    %21 = vector.load %arg6[%c0_11, %c0_12] : memref<1x256xf32, #tpu.memory_space<vmem>>, vector<1x256xf32>
    tpu.vector_store %arg6[%c0_11, %c0_12], %20 {strides = array<i32>} : memref<1x256xf32, #tpu.memory_space<vmem>>, vector<1x256xf32>,
    return
  }
  func.func @transform_0(%arg0: i32) -> (i32, i32) {
    %c0_i32 = arith.constant 0 : i32
    %c0_i32_0 = arith.constant 0 : i32
    return %arg0, %c0_i32 : i32, i32
  }
  func.func @transform_1(%arg0: i32) -> (i32, i32) {
    %c0_i32 = arith.constant 0 : i32
    %c0_i32_0 = arith.constant 0 : i32
    %c0_i32_1 = arith.constant 0 : i32
    return %c0_i32, %c0_i32_0 : i32, i32
  }
  func.func @transform_2(%arg0: i32) -> (i32, i32) {
    %c0_i32 = arith.constant 0 : i32
    %c0_i32_0 = arith.constant 0 : i32
    %c0_i32_1 = arith.constant 0 : i32
    return %c0_i32, %c0_i32_0 : i32, i32
  }
  func.func @transform_3(%arg0: i32) -> (i32, i32) {
    %c0_i32 = arith.constant 0 : i32
    %c0_i32_0 = arith.constant 0 : i32
    %c0_i32_1 = arith.constant 0 : i32
    return %c0_i32, %c0_i32_0 : i32, i32
  }
  func.func @transform_4(%arg0: i32) -> (i32, i32) {
    %c0_i32 = arith.constant 0 : i32
    %c0_i32_0 = arith.constant 0 : i32
    %c0_i32_1 = arith.constant 0 : i32
    return %c0_i32, %c0_i32_0 : i32, i32
  }
  func.func @transform_5(%arg0: i32) -> (i32, i32) {
    %c0_i32 = arith.constant 0 : i32
    %c0_i32_0 = arith.constant 0 : i32
    return %c0_i32, %arg0 : i32, i32
  }
}

</mosaic_0001>

<llo_original>
// kernel: attention_gated.1
$region0: #{attention_gated.1}
  #allocation0 [shape = 'u32[]', space=smem, size = 0x4, offset = 0x4, fixed_abs, tag = 'smem constant byte address 0x4 - core index']
  #allocation1 [shape = 'u32[144,128]{1,0:T(1,128)}', space=vmem, size = 0x12000, scoped, tag = 'internal scratch']
  #allocation2 [shape = 'f32[1,1]{1,0:T(1,128)S(1)}', space=vmem, size = 0x200, scoped, tag = 'scoped memory for attention_gated.1']
  %s0 = inlined_call_operand.vmem [shape: f32[300,512], index: 0, kind: input, shape index: {}]
  %s1 = inlined_call_operand.vmem [shape: bf16[512,256], index: 1, kind: input, shape index: {}]
  %s2 = inlined_call_operand.vmem [shape: f32[1,256], index: 2, kind: input, shape index: {}]
  %s3 = inlined_call_operand.vmem [shape: f32[1,128], index: 3, kind: input, shape index: {}]
  %s4 = inlined_call_operand.<no memory space> [shape: f32[1,1], index: 4, kind: input, shape index: {}]
  %s5 = inlined_call_operand.vmem [shape: f32[1,512], index: 5, kind: output, shape index: {}]
  %s6 = sld [smem:[#allocation0]]
  $region53: #{attention_gated.1} parent=0
    _
  %s8 = ssub.s32 1, %s6
  %s9 = scalar_select 0, %s8, %s6
  %v10 = vstv %s4
  %11 = vst [vmem:[#allocation2] sm:$0x1] %v10
  loop: start=0, step=1, limit=4
  $region2: #{attention_gated.1} parent=0 // loop_pre_header
    _
  $region3: #{attention_gated.1} parent=0 // loop_header
    %s13 = sphi 0, %s17
    %p14 = scmp.ge.s32.totalorder %s13, 4
    %s23 = sphi 0, %s25
    %s26 = sphi 0, %s23
    %s27 = sphi 0, %s26
    %s43 = sphi 0, %s27
    %s47 = sphi 0, %s47
    %s49 = sphi 0, %s47
    %s50 = sphi 0, %s49
    %s64 = sphi 0, %s50
    %s68 = sphi 0, %s68
    %s70 = sphi 0, %s68
    %s71 = sphi 0, %s70
    %s85 = sphi 0, %s71
    %s89 = sphi 0, %s89
    %s91 = sphi 0, %s89
    %s92 = sphi 0, %s91
    %s106 = sphi 0, %s92
    %s110 = sphi 0, %s110
    %s112 = sphi 0, %s110
    %s113 = sphi 0, %s112
    %s127 = sphi 0, %s113
    %s133 = sphi 0, %s135
    %s136 = sphi 0, %s133
    %s137 = sphi 0, %s136
    %s153 = sphi 0, %s137
  $region4: #{attention_gated.1} parent=0 // loop_header_branch
    %16 = sbr.rel (%p14) target = $region8
  $region5: #{attention_gated.1} parent=0 // loop_body
    %s18 = ssub.s32 %s13, 1
    %s19 = ssub.s32 %s13, 2
    %s20 = sadd.s32 %s13, 1
    %s21 = ssub.s32 %s13, %s20
    %p22 = scmp.eq.s32.totalorder %s21, 0
    %s24 = sadd.s32 %s23, 1
    %s25 = scalar_select %p22, %s23, %s24
    %p28 = pneg %p22
    %p29 = scmp.eq.s32.totalorder %s13, 1
    %p30 = por %p28, %p29
    %p31 = scmp.ne.s32.totalorder %s23, %s26
    %p32 = scmp.eq.s32.totalorder %s13, 0
    %p33 = por %p31, %p32
    %p34 = scmp.ne.s32.totalorder %s23, %s26
    %p35 = scmp.eq.s32.totalorder %s18, 1
    %p36 = por %p34, %p35
    %p37 = scmp.ne.s32.totalorder %s26, %s27
    %p38 = scmp.eq.s32.totalorder %s18, 0
    %p39 = por %p37, %p38
    %p40 = scmp.ne.s32.totalorder %s26, %s27
    %p41 = scmp.eq.s32.totalorder %s19, 1
    %p42 = por %p40, %p41
    %p44 = scmp.ne.s32.totalorder %s27, %s43
    %p45 = scmp.eq.s32.totalorder %s19, 0
    %p46 = por %p44, %p45
    %s48 = sadd.s32 %s47, 1
    %p51 = scmp.eq.s32.totalorder %s13, 1
    %p52 = scmp.ne.s32.totalorder %s47, %s49
    %p53 = scmp.eq.s32.totalorder %s13, 0
    %p54 = por %p52, %p53
    %p55 = scmp.ne.s32.totalorder %s47, %s49
    %p56 = scmp.eq.s32.totalorder %s18, 1
    %p57 = por %p55, %p56
    %p58 = scmp.ne.s32.totalorder %s49, %s50
    %p59 = scmp.eq.s32.totalorder %s18, 0
    %p60 = por %p58, %p59
    %p61 = scmp.ne.s32.totalorder %s49, %s50
    %p62 = scmp.eq.s32.totalorder %s19, 1
    %p63 = por %p61, %p62
    %p65 = scmp.ne.s32.totalorder %s50, %s64
    %p66 = scmp.eq.s32.totalorder %s19, 0
    %p67 = por %p65, %p66
    %s69 = sadd.s32 %s68, 1
    %p72 = scmp.eq.s32.totalorder %s13, 1
    %p73 = scmp.ne.s32.totalorder %s68, %s70
    %p74 = scmp.eq.s32.totalorder %s13, 0
    %p75 = por %p73, %p74
    %p76 = scmp.ne.s32.totalorder %s68, %s70
    %p77 = scmp.eq.s32.totalorder %s18, 1
    %p78 = por %p76, %p77
    %p79 = scmp.ne.s32.totalorder %s70, %s71
    %p80 = scmp.eq.s32.totalorder %s18, 0
    %p81 = por %p79, %p80
    %p82 = scmp.ne.s32.totalorder %s70, %s71
    %p83 = scmp.eq.s32.totalorder %s19, 1
    %p84 = por %p82, %p83
    %p86 = scmp.ne.s32.totalorder %s71, %s85
    %p87 = scmp.eq.s32.totalorder %s19, 0
    %p88 = por %p86, %p87
    %s90 = sadd.s32 %s89, 1
    %p93 = scmp.eq.s32.totalorder %s13, 1
    %p94 = scmp.ne.s32.totalorder %s89, %s91
    %p95 = scmp.eq.s32.totalorder %s13, 0
    %p96 = por %p94, %p95
    %p97 = scmp.ne.s32.totalorder %s89, %s91
    %p98 = scmp.eq.s32.totalorder %s18, 1
    %p99 = por %p97, %p98
    %p100 = scmp.ne.s32.totalorder %s91, %s92
    %p101 = scmp.eq.s32.totalorder %s18, 0
    %p102 = por %p100, %p101
    %p103 = scmp.ne.s32.totalorder %s91, %s92
    %p104 = scmp.eq.s32.totalorder %s19, 1
    %p105 = por %p103, %p104
    %p107 = scmp.ne.s32.totalorder %s92, %s106
    %p108 = scmp.eq.s32.totalorder %s19, 0
    %p109 = por %p107, %p108
    %s111 = sadd.s32 %s110, 1
    %p114 = scmp.eq.s32.totalorder %s13, 1
    %p115 = scmp.ne.s32.totalorder %s110, %s112
    %p116 = scmp.eq.s32.totalorder %s13, 0
    %p117 = por %p115, %p116
    %p118 = scmp.ne.s32.totalorder %s110, %s112
    %p119 = scmp.eq.s32.totalorder %s18, 1
    %p120 = por %p118, %p119
    %p121 = scmp.ne.s32.totalorder %s112, %s113
    %p122 = scmp.eq.s32.totalorder %s18, 0
    %p123 = por %p121, %p122
    %p124 = scmp.ne.s32.totalorder %s112, %s113
    %p125 = scmp.eq.s32.totalorder %s19, 1
    %p126 = por %p124, %p125
    %p128 = scmp.ne.s32.totalorder %s113, %s127
    %p129 = scmp.eq.s32.totalorder %s19, 0
    %p130 = por %p128, %p129
    %s131 = ssub.s32 %s13, %s20
    %p132 = scmp.eq.s32.totalorder %s131, 0
    %s134 = sadd.s32 %s133, 1
    %s135 = scalar_select %p132, %s133, %s134
    %p138 = pneg %p132
    %p139 = scmp.eq.s32.totalorder %s13, 1
    %p140 = por %p138, %p139
    %p141 = scmp.ne.s32.totalorder %s133, %s136
    %p142 = scmp.eq.s32.totalorder %s13, 0
    %p143 = por %p141, %p142
    %p144 = scmp.ne.s32.totalorder %s133, %s136
    %p145 = scmp.eq.s32.totalorder %s18, 1
    %p146 = por %p144, %p145
    %p147 = scmp.ne.s32.totalorder %s136, %s137
    %p148 = scmp.eq.s32.totalorder %s18, 0
    %p149 = por %p147, %p148
    %p150 = scmp.ne.s32.totalorder %s136, %s137
    %p151 = scmp.eq.s32.totalorder %s19, 1
    %p152 = por %p150, %p151
    %p154 = scmp.ne.s32.totalorder %s137, %s153
    %p155 = scmp.eq.s32.totalorder %s19, 0
    %p156 = por %p154, %p155
    %p157 = scmp.le.s32.totalorder 1, %s13
    %p158 = scmp.lt.s32.totalorder %s13, 3
    %p159 = pnand %p157, %p158
    %p160 = pneg %p159
    // Predicated region
    $region9: #{attention_gated.1} parent=5 // pred_check
      _
    $region10: #{attention_gated.1} parent=5 // pred_check_branch
      %162 = sbr.rel (%p159) target = $region12
    $region11: #{attention_gated.1} parent=5 // pred_region
      %s163 = ssub.s32 %s13, 1
      // Predicated region
      $region13: #{attention_gated.1} parent=11 // pred_check
        %p164 = pneg %p60
      $region14: #{attention_gated.1} parent=11 // pred_check_branch
        %166 = sbr.rel (%p164) target = $region16
      $region15: #{attention_gated.1} parent=11 // pred_region
        _
      $region16: #{attention_gated.1} parent=11 // pred_fallthru
        _
      // Predicated region
      $region17: #{attention_gated.1} parent=11 // pred_check
        %p167 = pneg %p81
      $region18: #{attention_gated.1} parent=11 // pred_check_branch
        %169 = sbr.rel (%p167) target = $region20
      $region19: #{attention_gated.1} parent=11 // pred_region
        _
      $region20: #{attention_gated.1} parent=11 // pred_fallthru
        _
      // Predicated region
      $region21: #{attention_gated.1} parent=11 // pred_check
        %p170 = pneg %p102
      $region22: #{attention_gated.1} parent=11 // pred_check_branch
        %172 = sbr.rel (%p170) target = $region24
      $region23: #{attention_gated.1} parent=11 // pred_region
        _
      $region24: #{attention_gated.1} parent=11 // pred_fallthru
        _
      // Predicated region
      $region25: #{attention_gated.1} parent=11 // pred_check
        %p173 = pneg %p123
      $region26: #{attention_gated.1} parent=11 // pred_check_branch
        %175 = sbr.rel (%p173) target = $region28
      $region27: #{attention_gated.1} parent=11 // pred_region
        _
      $region28: #{attention_gated.1} parent=11 // pred_fallthru
        _
    $region12: #{attention_gated.1} parent=5 // pred_fallthru
      _
    %p176 = scmp.lt.s32.totalorder %s13, 2
    // Predicated region
    $region29: #{attention_gated.1} parent=5 // pred_check
      %p177 = pneg %p176
    $region30: #{attention_gated.1} parent=5 // pred_check_branch
      %179 = sbr.rel (%p177) target = $region32
    $region31: #{attention_gated.1} parent=5 // pred_region
      // Predicated region
      $region33: #{attention_gated.1} parent=31 // pred_check
        %p180 = pneg %p33
      $region34: #{attention_gated.1} parent=31 // pred_check_branch
        %182 = sbr.rel (%p180) target = $region36
      $region35: #{attention_gated.1} parent=31 // pred_region
        %s183 = smul.u32 32, %s13
        %s184 = ssub.s32 38, %s183
        %p185 = scmp.lt.s32.totalorder %s184, 32
        %s186 = scalar_select %p185, %s184, 32
        %s187 = smul.u32 128, %s186
        %s188 = smul.u32 %s187, 4
        %p189 = scmp.lt.s32.totalorder %s183, 37
        %s190 = scalar_select %p189, %s183, 37
        %s191 = smul.addr %s190, 4
        %s192 = smul.addr %s191, 8
        %s193 = scalar_lea.vmem %s0, %s192
        %s194 = smul.u32 32, %s13
        %s195 = ssub.s32 38, %s194
        %p196 = scmp.lt.s32.totalorder %s195, 32
        %s197 = scalar_select %p196, %s195, 32
        %s198 = smul.u32 128, %s197
        %s199 = smul.u32 %s198, 4
      $region36: #{attention_gated.1} parent=31 // pred_fallthru
        _
    $region32: #{attention_gated.1} parent=5 // pred_fallthru
      _
    %p200 = scmp.le.s32.totalorder 1, %s13
    %p201 = scmp.lt.s32.totalorder %s13, 3
    %p202 = pnand %p200, %p201
    %p203 = pneg %p202
    // Predicated region
    $region37: #{attention_gated.1} parent=5 // pred_check
      _
    $region38: #{attention_gated.1} parent=5 // pred_check_branch
      %205 = sbr.rel (%p202) target = $region40
    $region39: #{attention_gated.1} parent=5 // pred_region
      %s206 = ssub.s32 %s13, 1
      %s207 = smul.u32 32, %s18
      %s208 = ssub.s32 38, %s207
      %p209 = scmp.lt.s32.totalorder %s208, 32
      %s210 = scalar_select %p209, %s208, 32
      %s211 = smul.u32 128, %s210
      %s212 = smul.u32 %s211, 4
      %p213 = scmp.lt.s32.totalorder %s207, 37
      %s214 = scalar_select %p213, %s207, 37
      %s215 = smul.addr %s214, 4
      %s216 = smul.addr %s215, 8
      %s217 = scalar_lea.vmem %s0, %s216
      %p218 = pneg %p39
      %p219 = pneg %p36
      %p220 = pneg %p60
      %p221 = pneg %p57
      %p222 = pneg %p81
      %p223 = pneg %p78
      %p224 = pneg %p102
      %p225 = pneg %p99
      %p226 = pneg %p123
      %p227 = pneg %p120
      %p228 = pneg %p149
      %p229 = pneg %p146
      %s230 = smul.u32 2, %s18
      %p231 = scmp.lt.s32.totalorder %s230, 3
      %s232 = scalar_select %p231, %s230, 3
      %s233 = scalar_lea.vmem %s5, %s232
      %s234 = smul.u32 32, %s18
      %s235 = ssub.s32 38, %s234
      %p236 = scmp.lt.s32.totalorder %s235, 32
      %s237 = scalar_select %p236, %s235, 32
      %s238 = smul.u32 128, %s237
      %s239 = smul.u32 %s238, 4
      %p240 = scmp.lt.s32.totalorder %s234, 37
      %s241 = scalar_select %p240, %s234, 37
      %s242 = smul.addr %s241, 4
      %s243 = smul.addr %s242, 8
      %s244 = scalar_lea.vmem %s0, %s243
      %s245 = smul.u32 32, %s18
      %s246 = ssub.s32 38, %s245
      %p247 = scmp.lt.s32.totalorder %s246, 32
      %s248 = scalar_select %p247, %s246, 32
      %s249 = smul.u32 128, %s248
      %s250 = smul.u32 %s249, 4
      %s251 = smul.u32 2, %s18
      %p252 = scmp.lt.s32.totalorder %s251, 3
      %s253 = scalar_select %p252, %s251, 3
      %s254 = scalar_lea.vmem %s5, %s253
      %s255 = smul.u32 2, %s18
      %v256 = vld [vmem:[%s244] sm:$0xff]
      %v257 = vld [vmem:[%s244 + $0x8] sm:$0xff]
      %v258 = vld [vmem:[%s244 + $0x10] sm:$0xff]
      %v259 = vld [vmem:[%s244 + $0x18] sm:$0xff]
      %v260 = vld [vmem:[%s244 + $0x20] sm:$0xff]
      %v261 = vld [vmem:[%s244 + $0x28] sm:$0xff]
      %v262 = vld [vmem:[%s244 + $0x30] sm:$0xff]
      %v263 = vld [vmem:[%s244 + $0x38] sm:$0xff]
      %v264 = vld [vmem:[%s244 + $0x40] sm:$0xff]
      %v265 = vld [vmem:[%s244 + $0x48] sm:$0xff]
      %v266 = vld [vmem:[%s244 + $0x50] sm:$0xff]
      %v267 = vld [vmem:[%s244 + $0x58] sm:$0xff]
      %v268 = vld [vmem:[%s244 + $0x60] sm:$0xff]
      %v269 = vld [vmem:[%s244 + $0x68] sm:$0xff]
      %v270 = vld [vmem:[%s244 + $0x70] sm:$0xff]
      %v271 = vld [vmem:[%s244 + $0x78] sm:$0xff]
      %v272 = vld [vmem:[%s244 + $0x80] sm:$0xff]
      %v273 = vld [vmem:[%s244 + $0x88] sm:$0xff]
      %v274 = vld [vmem:[%s244 + $0x90] sm:$0xff]
      %v275 = vld [vmem:[%s244 + $0x98] sm:$0xff]
      %v276 = vld [vmem:[%s244 + $0xa0] sm:$0xff]
      %v277 = vld [vmem:[%s244 + $0xa8] sm:$0xff]
      %v278 = vld [vmem:[%s244 + $0xb0] sm:$0xff]
      %v279 = vld [vmem:[%s244 + $0xb8] sm:$0xff]
      %v280 = vld [vmem:[%s244 + $0xc0] sm:$0xff]
      %v281 = vld [vmem:[%s244 + $0xc8] sm:$0xff]
      %v282 = vld [vmem:[%s244 + $0xd0] sm:$0xff]
      %v283 = vld [vmem:[%s244 + $0xd8] sm:$0xff]
      %v284 = vld [vmem:[%s244 + $0xe0] sm:$0xff]
      %v285 = vld [vmem:[%s244 + $0xe8] sm:$0xff]
      %v286 = vld [vmem:[%s244 + $0xf0] sm:$0xff]
      %v287 = vld [vmem:[%s244 + $0xf8] sm:$0xff]
      %v288 = vld [vmem:[%s244 + $0x100] sm:$0xff]
      %v289 = vld [vmem:[%s244 + $0x108] sm:$0xff]
      %v290 = vld [vmem:[%s244 + $0x110] sm:$0xff]
      %v291 = vld [vmem:[%s244 + $0x118] sm:$0xff]
      %v292 = vld [vmem:[%s244 + $0x120] sm:$0xff]
      %v293 = vld [vmem:[%s244 + $0x128] sm:$0xff]
      %v294 = vld [vmem:[%s244 + $0x130] sm:$0xff]
      %v295 = vld [vmem:[%s244 + $0x138] sm:$0xff]
      %v296 = vld [vmem:[%s244 + $0x140] sm:$0xff]
      %v297 = vld [vmem:[%s244 + $0x148] sm:$0xff]
      %v298 = vld [vmem:[%s244 + $0x150] sm:$0xff]
      %v299 = vld [vmem:[%s244 + $0x158] sm:$0xff]
      %v300 = vld [vmem:[%s244 + $0x160] sm:$0xff]
      %v301 = vld [vmem:[%s244 + $0x168] sm:$0xff]
      %v302 = vld [vmem:[%s244 + $0x170] sm:$0xff]
      %v303 = vld [vmem:[%s244 + $0x178] sm:$0xff]
      %v304 = vld [vmem:[%s244 + $0x180] sm:$0xff]
      %v305 = vld [vmem:[%s244 + $0x188] sm:$0xff]
      %v306 = vld [vmem:[%s244 + $0x190] sm:$0xff]
      %v307 = vld [vmem:[%s244 + $0x198] sm:$0xff]
      %v308 = vld [vmem:[%s244 + $0x1a0] sm:$0xff]
      %v309 = vld [vmem:[%s244 + $0x1a8] sm:$0xff]
      %v310 = vld [vmem:[%s244 + $0x1b0] sm:$0xff]
      %v311 = vld [vmem:[%s244 + $0x1b8] sm:$0xff]
      %v312 = vld [vmem:[%s244 + $0x1c0] sm:$0xff]
      %v313 = vld [vmem:[%s244 + $0x1c8] sm:$0xff]
      %v314 = vld [vmem:[%s244 + $0x1d0] sm:$0xff]
      %v315 = vld [vmem:[%s244 + $0x1d8] sm:$0xff]
      %v316 = vld [vmem:[%s244 + $0x1e0] sm:$0xff]
      %v317 = vld [vmem:[%s244 + $0x1e8] sm:$0xff]
      %v318 = vld [vmem:[%s244 + $0x1f0] sm:$0xff]
      %v319 = vld [vmem:[%s244 + $0x1f8] sm:$0xff]
      %v320 = vld [vmem:[%s244 + $0x200] sm:$0xff]
      %v321 = vld [vmem:[%s244 + $0x208] sm:$0xff]
      %v322 = vld [vmem:[%s244 + $0x210] sm:$0xff]
      %v323 = vld [vmem:[%s244 + $0x218] sm:$0xff]
      %v324 = vld [vmem:[%s244 + $0x220] sm:$0xff]
      %v325 = vld [vmem:[%s244 + $0x228] sm:$0xff]
      %v326 = vld [vmem:[%s244 + $0x230] sm:$0xff]
      %v327 = vld [vmem:[%s244 + $0x238] sm:$0xff]
      %v328 = vld [vmem:[%s244 + $0x240] sm:$0xff]
      %v329 = vld [vmem:[%s244 + $0x248] sm:$0xff]
      %v330 = vld [vmem:[%s244 + $0x250] sm:$0xff]
      %v331 = vld [vmem:[%s244 + $0x258] sm:$0xff]
      %v332 = vld [vmem:[%s244 + $0x260] sm:$0xff]
      %v333 = vld [vmem:[%s244 + $0x268] sm:$0xff]
      %v334 = vld [vmem:[%s244 + $0x270] sm:$0xff]
      %v335 = vld [vmem:[%s244 + $0x278] sm:$0xff]
      %v336 = vld [vmem:[%s244 + $0x280] sm:$0xff]
      %v337 = vld [vmem:[%s244 + $0x288] sm:$0xff]
      %v338 = vld [vmem:[%s244 + $0x290] sm:$0xff]
      %v339 = vld [vmem:[%s244 + $0x298] sm:$0xff]
      %v340 = vld [vmem:[%s244 + $0x2a0] sm:$0xff]
      %v341 = vld [vmem:[%s244 + $0x2a8] sm:$0xff]
      %v342 = vld [vmem:[%s244 + $0x2b0] sm:$0xff]
      %v343 = vld [vmem:[%s244 + $0x2b8] sm:$0xff]
      %v344 = vld [vmem:[%s244 + $0x2c0] sm:$0xff]
      %v345 = vld [vmem:[%s244 + $0x2c8] sm:$0xff]
      %v346 = vld [vmem:[%s244 + $0x2d0] sm:$0xff]
      %v347 = vld [vmem:[%s244 + $0x2d8] sm:$0xff]
      %v348 = vld [vmem:[%s244 + $0x2e0] sm:$0xff]
      %v349 = vld [vmem:[%s244 + $0x2e8] sm:$0xff]
      %v350 = vld [vmem:[%s244 + $0x2f0] sm:$0xff]
      %v351 = vld [vmem:[%s244 + $0x2f8] sm:$0xff]
      %v352 = vld [vmem:[%s244 + $0x300] sm:$0xff]
      %v353 = vld [vmem:[%s244 + $0x308] sm:$0xff]
      %v354 = vld [vmem:[%s244 + $0x310] sm:$0xff]
      %v355 = vld [vmem:[%s244 + $0x318] sm:$0xff]
      %v356 = vld [vmem:[%s244 + $0x320] sm:$0xff]
      %v357 = vld [vmem:[%s244 + $0x328] sm:$0xff]
      %v358 = vld [vmem:[%s244 + $0x330] sm:$0xff]
      %v359 = vld [vmem:[%s244 + $0x338] sm:$0xff]
      %v360 = vld [vmem:[%s244 + $0x340] sm:$0xff]
      %v361 = vld [vmem:[%s244 + $0x348] sm:$0xff]
      %v362 = vld [vmem:[%s244 + $0x350] sm:$0xff]
      %v363 = vld [vmem:[%s244 + $0x358] sm:$0xff]
      %v364 = vld [vmem:[%s244 + $0x360] sm:$0xff]
      %v365 = vld [vmem:[%s244 + $0x368] sm:$0xff]
      %v366 = vld [vmem:[%s244 + $0x370] sm:$0xff]
      %v367 = vld [vmem:[%s244 + $0x378] sm:$0xff]
      %v368 = vld [vmem:[%s244 + $0x380] sm:$0xff]
      %v369 = vld [vmem:[%s244 + $0x388] sm:$0xff]
      %v370 = vld [vmem:[%s244 + $0x390] sm:$0xff]
      %v371 = vld [vmem:[%s244 + $0x398] sm:$0xff]
      %v372 = vld [vmem:[%s244 + $0x3a0] sm:$0xff]
      %v373 = vld [vmem:[%s244 + $0x3a8] sm:$0xff]
      %v374 = vld [vmem:[%s244 + $0x3b0] sm:$0xff]
      %v375 = vld [vmem:[%s244 + $0x3b8] sm:$0xff]
      %v376 = vld [vmem:[%s244 + $0x3c0] sm:$0xff]
      %v377 = vld [vmem:[%s244 + $0x3c8] sm:$0xff]
      %v378 = vld [vmem:[%s244 + $0x3d0] sm:$0xff]
      %v379 = vld [vmem:[%s244 + $0x3d8] sm:$0xff]
      %v380 = vld [vmem:[%s244 + $0x3e0] sm:$0xff]
      %v381 = vld [vmem:[%s244 + $0x3e8] sm:$0xff]
      %v382 = vld [vmem:[%s244 + $0x3f0] sm:$0xff]
      %v383 = vld [vmem:[%s244 + $0x3f8] sm:$0xff]
      %v384 = vpack.c.bf16 %v260, %v256
      %v385 = vpack.c.bf16 %v261, %v257
      %v386 = vpack.c.bf16 %v262, %v258
      %v387 = vpack.c.bf16 %v263, %v259
      %v388 = vpack.c.bf16 %v268, %v264
      %v389 = vpack.c.bf16 %v269, %v265
      %v390 = vpack.c.bf16 %v270, %v266
      %v391 = vpack.c.bf16 %v271, %v267
      %v392 = vpack.c.bf16 %v276, %v272
      %v393 = vpack.c.bf16 %v277, %v273
      %v394 = vpack.c.bf16 %v278, %v274
      %v395 = vpack.c.bf16 %v279, %v275
      %v396 = vpack.c.bf16 %v284, %v280
      %v397 = vpack.c.bf16 %v285, %v281
      %v398 = vpack.c.bf16 %v286, %v282
      %v399 = vpack.c.bf16 %v287, %v283
      %v400 = vpack.c.bf16 %v292, %v288
      %v401 = vpack.c.bf16 %v293, %v289
      %v402 = vpack.c.bf16 %v294, %v290
      %v403 = vpack.c.bf16 %v295, %v291
      %v404 = vpack.c.bf16 %v300, %v296
      %v405 = vpack.c.bf16 %v301, %v297
      %v406 = vpack.c.bf16 %v302, %v298
      %v407 = vpack.c.bf16 %v303, %v299
      %v408 = vpack.c.bf16 %v308, %v304
      %v409 = vpack.c.bf16 %v309, %v305
      %v410 = vpack.c.bf16 %v310, %v306
      %v411 = vpack.c.bf16 %v311, %v307
      %v412 = vpack.c.bf16 %v316, %v312
      %v413 = vpack.c.bf16 %v317, %v313
      %v414 = vpack.c.bf16 %v318, %v314
      %v415 = vpack.c.bf16 %v319, %v315
      %v416 = vpack.c.bf16 %v324, %v320
      %v417 = vpack.c.bf16 %v325, %v321
      %v418 = vpack.c.bf16 %v326, %v322
      %v419 = vpack.c.bf16 %v327, %v323
      %v420 = vpack.c.bf16 %v332, %v328
      %v421 = vpack.c.bf16 %v333, %v329
      %v422 = vpack.c.bf16 %v334, %v330
      %v423 = vpack.c.bf16 %v335, %v331
      %v424 = vpack.c.bf16 %v340, %v336
      %v425 = vpack.c.bf16 %v341, %v337
      %v426 = vpack.c.bf16 %v342, %v338
      %v427 = vpack.c.bf16 %v343, %v339
      %v428 = vpack.c.bf16 %v348, %v344
      %v429 = vpack.c.bf16 %v349, %v345
      %v430 = vpack.c.bf16 %v350, %v346
      %v431 = vpack.c.bf16 %v351, %v347
      %v432 = vpack.c.bf16 %v356, %v352
      %v433 = vpack.c.bf16 %v357, %v353
      %v434 = vpack.c.bf16 %v358, %v354
      %v435 = vpack.c.bf16 %v359, %v355
      %v436 = vpack.c.bf16 %v364, %v360
      %v437 = vpack.c.bf16 %v365, %v361
      %v438 = vpack.c.bf16 %v366, %v362
      %v439 = vpack.c.bf16 %v367, %v363
      %v440 = vpack.c.bf16 %v372, %v368
      %v441 = vpack.c.bf16 %v373, %v369
      %v442 = vpack.c.bf16 %v374, %v370
      %v443 = vpack.c.bf16 %v375, %v371
      %v444 = vpack.c.bf16 %v380, %v376
      %v445 = vpack.c.bf16 %v381, %v377
      %v446 = vpack.c.bf16 %v382, %v378
      %v447 = vpack.c.bf16 %v383, %v379
      %v448 = vld [vmem:[%s1] sm:$0xff]
      %v449 = vld [vmem:[%s1 + $0x8] sm:$0xff]
      %v450 = vld [vmem:[%s1 + $0x10] sm:$0xff]
      %v451 = vld [vmem:[%s1 + $0x18] sm:$0xff]
      %v452 = vld [vmem:[%s1 + $0x20] sm:$0xff]
      %v453 = vld [vmem:[%s1 + $0x28] sm:$0xff]
      %v454 = vld [vmem:[%s1 + $0x30] sm:$0xff]
      %v455 = vld [vmem:[%s1 + $0x38] sm:$0xff]
      %v456 = vld [vmem:[%s1 + $0x40] sm:$0xff]
      %v457 = vld [vmem:[%s1 + $0x48] sm:$0xff]
      %v458 = vld [vmem:[%s1 + $0x50] sm:$0xff]
      %v459 = vld [vmem:[%s1 + $0x58] sm:$0xff]
      %v460 = vld [vmem:[%s1 + $0x60] sm:$0xff]
      %v461 = vld [vmem:[%s1 + $0x68] sm:$0xff]
      %v462 = vld [vmem:[%s1 + $0x70] sm:$0xff]
      %v463 = vld [vmem:[%s1 + $0x78] sm:$0xff]
      %v464 = vld [vmem:[%s1 + $0x80] sm:$0xff]
      %v465 = vld [vmem:[%s1 + $0x88] sm:$0xff]
      %v466 = vld [vmem:[%s1 + $0x90] sm:$0xff]
      %v467 = vld [vmem:[%s1 + $0x98] sm:$0xff]
      %v468 = vld [vmem:[%s1 + $0xa0] sm:$0xff]
      %v469 = vld [vmem:[%s1 + $0xa8] sm:$0xff]
      %v470 = vld [vmem:[%s1 + $0xb0] sm:$0xff]
      %v471 = vld [vmem:[%s1 + $0xb8] sm:$0xff]
      %v472 = vld [vmem:[%s1 + $0xc0] sm:$0xff]
      %v473 = vld [vmem:[%s1 + $0xc8] sm:$0xff]
      %v474 = vld [vmem:[%s1 + $0xd0] sm:$0xff]
      %v475 = vld [vmem:[%s1 + $0xd8] sm:$0xff]
      %v476 = vld [vmem:[%s1 + $0xe0] sm:$0xff]
      %v477 = vld [vmem:[%s1 + $0xe8] sm:$0xff]
      %v478 = vld [vmem:[%s1 + $0xf0] sm:$0xff]
      %v479 = vld [vmem:[%s1 + $0xf8] sm:$0xff]
      %v480 = vld [vmem:[%s1 + $0x100] sm:$0xff]
      %v481 = vld [vmem:[%s1 + $0x108] sm:$0xff]
      %v482 = vld [vmem:[%s1 + $0x110] sm:$0xff]
      %v483 = vld [vmem:[%s1 + $0x118] sm:$0xff]
      %v484 = vld [vmem:[%s1 + $0x120] sm:$0xff]
      %v485 = vld [vmem:[%s1 + $0x128] sm:$0xff]
      %v486 = vld [vmem:[%s1 + $0x130] sm:$0xff]
      %v487 = vld [vmem:[%s1 + $0x138] sm:$0xff]
      %v488 = vld [vmem:[%s1 + $0x140] sm:$0xff]
      %v489 = vld [vmem:[%s1 + $0x148] sm:$0xff]
      %v490 = vld [vmem:[%s1 + $0x150] sm:$0xff]
      %v491 = vld [vmem:[%s1 + $0x158] sm:$0xff]
      %v492 = vld [vmem:[%s1 + $0x160] sm:$0xff]
      %v493 = vld [vmem:[%s1 + $0x168] sm:$0xff]
      %v494 = vld [vmem:[%s1 + $0x170] sm:$0xff]
      %v495 = vld [vmem:[%s1 + $0x178] sm:$0xff]
      %v496 = vld [vmem:[%s1 + $0x180] sm:$0xff]
      %v497 = vld [vmem:[%s1 + $0x188] sm:$0xff]
      %v498 = vld [vmem:[%s1 + $0x190] sm:$0xff]
      %v499 = vld [vmem:[%s1 + $0x198] sm:$0xff]
      %v500 = vld [vmem:[%s1 + $0x1a0] sm:$0xff]
      %v501 = vld [vmem:[%s1 + $0x1a8] sm:$0xff]
      %v502 = vld [vmem:[%s1 + $0x1b0] sm:$0xff]
      %v503 = vld [vmem:[%s1 + $0x1b8] sm:$0xff]
      %v504 = vld [vmem:[%s1 + $0x1c0] sm:$0xff]
      %v505 = vld [vmem:[%s1 + $0x1c8] sm:$0xff]
      %v506 = vld [vmem:[%s1 + $0x1d0] sm:$0xff]
      %v507 = vld [vmem:[%s1 + $0x1d8] sm:$0xff]
      %v508 = vld [vmem:[%s1 + $0x1e0] sm:$0xff]
      %v509 = vld [vmem:[%s1 + $0x1e8] sm:$0xff]
      %v510 = vld [vmem:[%s1 + $0x1f0] sm:$0xff]
      %v511 = vld [vmem:[%s1 + $0x1f8] sm:$0xff]
      %v512 = vld [vmem:[%s2] sm:$0x3]
      %v514 = vlaneseq
      %v515 = vshrl.u32 %v514, 7
      %v516 = vsub.s32 0, %v515
      %v517 = vrot.slane %v512, %v516
      %v518 = vlaneseq
      %v519 = vshrl.u32 %v518, 7
      %v520 = vsub.s32 1, %v519
      %v521 = vrot.slane %v512, %v520
      %v588 = vunpack.c.l.b16 %v448
      %v589 = vunpack.c.h.b16 %v448
      %v590 = vunpack.c.l.b16 %v449
      %v591 = vunpack.c.h.b16 %v449
      %v592 = vunpack.c.l.b16 %v450
      %v593 = vunpack.c.h.b16 %v450
      %v594 = vunpack.c.l.b16 %v451
      %v595 = vunpack.c.h.b16 %v451
      %v596 = vunpack.c.l.b16 %v452
      %v597 = vunpack.c.h.b16 %v452
      %v598 = vunpack.c.l.b16 %v453
      %v599 = vunpack.c.h.b16 %v453
      %v600 = vunpack.c.l.b16 %v454
      %v601 = vunpack.c.h.b16 %v454
      %v602 = vunpack.c.l.b16 %v455
      %v603 = vunpack.c.h.b16 %v455
      %v604 = vunpack.c.l.b16 %v456
      %v605 = vunpack.c.h.b16 %v456
      %v606 = vunpack.c.l.b16 %v457
      %v607 = vunpack.c.h.b16 %v457
      %v608 = vunpack.c.l.b16 %v458
      %v609 = vunpack.c.h.b16 %v458
      %v610 = vunpack.c.l.b16 %v459
      %v611 = vunpack.c.h.b16 %v459
      %v612 = vunpack.c.l.b16 %v460
      %v613 = vunpack.c.h.b16 %v460
      %v614 = vunpack.c.l.b16 %v461
      %v615 = vunpack.c.h.b16 %v461
      %v616 = vunpack.c.l.b16 %v462
      %v617 = vunpack.c.h.b16 %v462
      %v618 = vunpack.c.l.b16 %v463
      %v619 = vunpack.c.h.b16 %v463
      %v620 = vunpack.c.l.b16 %v464
      %v621 = vunpack.c.h.b16 %v464
      %v622 = vunpack.c.l.b16 %v465
      %v623 = vunpack.c.h.b16 %v465
      %v624 = vunpack.c.l.b16 %v466
      %v625 = vunpack.c.h.b16 %v466
      %v626 = vunpack.c.l.b16 %v467
      %v627 = vunpack.c.h.b16 %v467
      %v628 = vunpack.c.l.b16 %v468
      %v629 = vunpack.c.h.b16 %v468
      %v630 = vunpack.c.l.b16 %v469
      %v631 = vunpack.c.h.b16 %v469
      %v632 = vunpack.c.l.b16 %v470
      %v633 = vunpack.c.h.b16 %v470
      %v634 = vunpack.c.l.b16 %v471
      %v635 = vunpack.c.h.b16 %v471
      %v636 = vunpack.c.l.b16 %v472
      %v637 = vunpack.c.h.b16 %v472
      %v638 = vunpack.c.l.b16 %v473
      %v639 = vunpack.c.h.b16 %v473
      %v640 = vunpack.c.l.b16 %v474
      %v641 = vunpack.c.h.b16 %v474
      %v642 = vunpack.c.l.b16 %v475
      %v643 = vunpack.c.h.b16 %v475
      %v644 = vunpack.c.l.b16 %v476
      %v645 = vunpack.c.h.b16 %v476
      %v646 = vunpack.c.l.b16 %v477
      %v647 = vunpack.c.h.b16 %v477
      %v648 = vunpack.c.l.b16 %v478
      %v649 = vunpack.c.h.b16 %v478
      %v650 = vunpack.c.l.b16 %v479
      %v651 = vunpack.c.h.b16 %v479
      %v652 = vunpack.c.l.b16 %v480
      %v653 = vunpack.c.h.b16 %v480
      %v654 = vunpack.c.l.b16 %v481
      %v655 = vunpack.c.h.b16 %v481
      %v656 = vunpack.c.l.b16 %v482
      %v657 = vunpack.c.h.b16 %v482
      %v658 = vunpack.c.l.b16 %v483
      %v659 = vunpack.c.h.b16 %v483
      %v660 = vunpack.c.l.b16 %v484
      %v661 = vunpack.c.h.b16 %v484
      %v662 = vunpack.c.l.b16 %v485
      %v663 = vunpack.c.h.b16 %v485
      %v664 = vunpack.c.l.b16 %v486
      %v665 = vunpack.c.h.b16 %v486
      %v666 = vunpack.c.l.b16 %v487
      %v667 = vunpack.c.h.b16 %v487
      %v668 = vunpack.c.l.b16 %v488
      %v669 = vunpack.c.h.b16 %v488
      %v670 = vunpack.c.l.b16 %v489
      %v671 = vunpack.c.h.b16 %v489
      %v672 = vunpack.c.l.b16 %v490
      %v673 = vunpack.c.h.b16 %v490
      %v674 = vunpack.c.l.b16 %v491
      %v675 = vunpack.c.h.b16 %v491
      %v676 = vunpack.c.l.b16 %v492
      %v677 = vunpack.c.h.b16 %v492
      %v678 = vunpack.c.l.b16 %v493
      %v679 = vunpack.c.h.b16 %v493
      %v680 = vunpack.c.l.b16 %v494
      %v681 = vunpack.c.h.b16 %v494
      %v682 = vunpack.c.l.b16 %v495
      %v683 = vunpack.c.h.b16 %v495
      %v684 = vunpack.c.l.b16 %v496
      %v685 = vunpack.c.h.b16 %v496
      %v686 = vunpack.c.l.b16 %v497
      %v687 = vunpack.c.h.b16 %v497
      %v688 = vunpack.c.l.b16 %v498
      %v689 = vunpack.c.h.b16 %v498
      %v690 = vunpack.c.l.b16 %v499
      %v691 = vunpack.c.h.b16 %v499
      %v692 = vunpack.c.l.b16 %v500
      %v693 = vunpack.c.h.b16 %v500
      %v694 = vunpack.c.l.b16 %v501
      %v695 = vunpack.c.h.b16 %v501
      %v696 = vunpack.c.l.b16 %v502
      %v697 = vunpack.c.h.b16 %v502
      %v698 = vunpack.c.l.b16 %v503
      %v699 = vunpack.c.h.b16 %v503
      %v700 = vunpack.c.l.b16 %v504
      %v701 = vunpack.c.h.b16 %v504
      %v702 = vunpack.c.l.b16 %v505
      %v703 = vunpack.c.h.b16 %v505
      %v704 = vunpack.c.l.b16 %v506
      %v705 = vunpack.c.h.b16 %v506
      %v706 = vunpack.c.l.b16 %v507
      %v707 = vunpack.c.h.b16 %v507
      %v708 = vunpack.c.l.b16 %v508
      %v709 = vunpack.c.h.b16 %v508
      %v710 = vunpack.c.l.b16 %v509
      %v711 = vunpack.c.h.b16 %v509
      %v712 = vunpack.c.l.b16 %v510
      %v713 = vunpack.c.h.b16 %v510
      %v714 = vunpack.c.l.b16 %v511
      %v715 = vunpack.c.h.b16 %v511
      %v716 = vpack.c.b16 %v590, %v588
      %v717 = vpack.c.b16 %v591, %v589
      %v718 = vpack.c.b16 %v594, %v592
      %v719 = vpack.c.b16 %v595, %v593
      %v720 = vpack.c.b16 %v598, %v596
      %v721 = vpack.c.b16 %v599, %v597
      %v722 = vpack.c.b16 %v602, %v600
      %v723 = vpack.c.b16 %v603, %v601
      %v724 = vpack.c.b16 %v606, %v604
      %v725 = vpack.c.b16 %v607, %v605
      %v726 = vpack.c.b16 %v610, %v608
      %v727 = vpack.c.b16 %v611, %v609
      %v728 = vpack.c.b16 %v614, %v612
      %v729 = vpack.c.b16 %v615, %v613
      %v730 = vpack.c.b16 %v618, %v616
      %v731 = vpack.c.b16 %v619, %v617
      %v732 = vpack.c.b16 %v622, %v620
      %v733 = vpack.c.b16 %v623, %v621
      %v734 = vpack.c.b16 %v626, %v624
      %v735 = vpack.c.b16 %v627, %v625
      %v736 = vpack.c.b16 %v630, %v628
      %v737 = vpack.c.b16 %v631, %v629
      %v738 = vpack.c.b16 %v634, %v632
      %v739 = vpack.c.b16 %v635, %v633
      %v740 = vpack.c.b16 %v638, %v636
      %v741 = vpack.c.b16 %v639, %v637
      %v742 = vpack.c.b16 %v642, %v640
      %v743 = vpack.c.b16 %v643, %v641
      %v744 = vpack.c.b16 %v646, %v644
      %v745 = vpack.c.b16 %v647, %v645
      %v746 = vpack.c.b16 %v650, %v648
      %v747 = vpack.c.b16 %v651, %v649
      %v748 = vpack.c.b16 %v654, %v652
      %v749 = vpack.c.b16 %v655, %v653
      %v750 = vpack.c.b16 %v658, %v656
      %v751 = vpack.c.b16 %v659, %v657
      %v752 = vpack.c.b16 %v662, %v660
      %v753 = vpack.c.b16 %v663, %v661
      %v754 = vpack.c.b16 %v666, %v664
      %v755 = vpack.c.b16 %v667, %v665
      %v756 = vpack.c.b16 %v670, %v668
      %v757 = vpack.c.b16 %v671, %v669
      %v758 = vpack.c.b16 %v674, %v672
      %v759 = vpack.c.b16 %v675, %v673
      %v760 = vpack.c.b16 %v678, %v676
      %v761 = vpack.c.b16 %v679, %v677
      %v762 = vpack.c.b16 %v682, %v680
      %v763 = vpack.c.b16 %v683, %v681
      %v764 = vpack.c.b16 %v686, %v684
      %v765 = vpack.c.b16 %v687, %v685
      %v766 = vpack.c.b16 %v690, %v688
      %v767 = vpack.c.b16 %v691, %v689
      %v768 = vpack.c.b16 %v694, %v692
      %v769 = vpack.c.b16 %v695, %v693
      %v770 = vpack.c.b16 %v698, %v696
      %v771 = vpack.c.b16 %v699, %v697
      %v772 = vpack.c.b16 %v702, %v700
      %v773 = vpack.c.b16 %v703, %v701
      %v774 = vpack.c.b16 %v706, %v704
      %v775 = vpack.c.b16 %v707, %v705
      %v776 = vpack.c.b16 %v710, %v708
      %v777 = vpack.c.b16 %v711, %v709
      %v778 = vpack.c.b16 %v714, %v712
      %v779 = vpack.c.b16 %v715, %v713
      %844 = vmatprep.subr.bf16.mxu0 %v717
      %845 = vmatpush1.bf16.msra.mxu0 %v716
      %846 = vmatprep.subr.bf16.mxu0 %v719
      %847 = vmatpush1.bf16.msra.mxu0 %v718
      %848 = vmatprep.subr.bf16.mxu0 %v721
      %849 = vmatpush1.bf16.msra.mxu0 %v720
      %850 = vmatprep.subr.bf16.mxu0 %v723
      %851 = vmatpush1.bf16.msra.mxu0 %v722
      %852 = vmatprep.subr.bf16.mxu0 %v725
      %853 = vmatpush1.bf16.msra.mxu0 %v724
      %854 = vmatprep.subr.bf16.mxu0 %v727
      %855 = vmatpush1.bf16.msra.mxu0 %v726
      %856 = vmatprep.subr.bf16.mxu0 %v729
      %857 = vmatpush1.bf16.msra.mxu0 %v728
      %858 = vmatprep.subr.bf16.mxu0 %v731
      %859 = vmatpush1.bf16.msra.mxu0 %v730
      %860 = vmatprep.subr.bf16.mxu0 %v733
      %861 = vmatpush1.bf16.msra.mxu0 %v732
      %862 = vmatprep.subr.bf16.mxu0 %v735
      %863 = vmatpush1.bf16.msra.mxu0 %v734
      %864 = vmatprep.subr.bf16.mxu0 %v737
      %865 = vmatpush1.bf16.msra.mxu0 %v736
      %866 = vmatprep.subr.bf16.mxu0 %v739
      %867 = vmatpush1.bf16.msra.mxu0 %v738
      %868 = vmatprep.subr.bf16.mxu0 %v741
      %869 = vmatpush1.bf16.msra.mxu0 %v740
      %870 = vmatprep.subr.bf16.mxu0 %v743
      %871 = vmatpush1.bf16.msra.mxu0 %v742
      %872 = vmatprep.subr.bf16.mxu0 %v745
      %873 = vmatpush1.bf16.msra.mxu0 %v744
      %874 = vmatprep.subr.bf16.mxu0 %v747
      %875 = vmatpush1.bf16.msra.mxu0 %v746
      %876 = vmatprep.mubr.bf16.mxu0 %v385
      %877 = vmatmul.mubr.bf16.gmra.mrb[0].mxu0 %v384
      %v878 = vpop.f32.mrb[0].mxu0
      %v879 = vadd.f32 %v517, %v878
      %v880 = vpop.f32.mrb[0].mxu0
      %v881 = vadd.f32 %v521, %v880
      %v882 = vpop.f32.mrb[0].mxu0
      %v883 = vadd.f32 %v517, %v882
      %v884 = vpop.f32.mrb[0].mxu0
      %v885 = vadd.f32 %v521, %v884
      %886 = vmatprep.mubr.bf16.mxu0 %v389
      %887 = vmatmul.mubr.bf16.gmra.mrb[0].mxu0 %v388
      %v888 = vpop.f32.mrb[0].mxu0
      %v889 = vadd.f32 %v517, %v888
      %v890 = vpop.f32.mrb[0].mxu0
      %v891 = vadd.f32 %v521, %v890
      %v892 = vpop.f32.mrb[0].mxu0
      %v893 = vadd.f32 %v517, %v892
      %v894 = vpop.f32.mrb[0].mxu0
      %v895 = vadd.f32 %v521, %v894
      %896 = vmatprep.mubr.bf16.mxu0 %v393
      %897 = vmatmul.mubr.bf16.gmra.mrb[0].mxu0 %v392
      %v898 = vpop.f32.mrb[0].mxu0
      %v899 = vadd.f32 %v517, %v898
      %v900 = vpop.f32.mrb[0].mxu0
      %v901 = vadd.f32 %v521, %v900
      %v902 = vpop.f32.mrb[0].mxu0
      %v903 = vadd.f32 %v517, %v902
      %v904 = vpop.f32.mrb[0].mxu0
      %v905 = vadd.f32 %v521, %v904
      %906 = vmatprep.mubr.bf16.mxu0 %v397
      %907 = vmatmul.mubr.bf16.gmra.mrb[0].mxu0 %v396
      %v908 = vpop.f32.mrb[0].mxu0
      %v909 = vadd.f32 %v517, %v908
      %v910 = vpop.f32.mrb[0].mxu0
      %v911 = vadd.f32 %v521, %v910
      %v912 = vpop.f32.mrb[0].mxu0
      %v913 = vadd.f32 %v517, %v912
      %v914 = vpop.f32.mrb[0].mxu0
      %v915 = vadd.f32 %v521, %v914
      %916 = vmatprep.mubr.bf16.mxu0 %v401
      %917 = vmatmul.mubr.bf16.gmra.mrb[0].mxu0 %v400
      %v918 = vpop.f32.mrb[0].mxu0
      %v919 = vadd.f32 %v517, %v918
      %v920 = vpop.f32.mrb[0].mxu0
      %v921 = vadd.f32 %v521, %v920
      %v922 = vpop.f32.mrb[0].mxu0
      %v923 = vadd.f32 %v517, %v922
      %v924 = vpop.f32.mrb[0].mxu0
      %v925 = vadd.f32 %v521, %v924
      %926 = vmatprep.mubr.bf16.mxu0 %v405
      %927 = vmatmul.mubr.bf16.gmra.mrb[0].mxu0 %v404
      %v928 = vpop.f32.mrb[0].mxu0
      %v929 = vadd.f32 %v517, %v928
      %v930 = vpop.f32.mrb[0].mxu0
      %v931 = vadd.f32 %v521, %v930
      %v932 = vpop.f32.mrb[0].mxu0
      %v933 = vadd.f32 %v517, %v932
      %v934 = vpop.f32.mrb[0].mxu0
      %v935 = vadd.f32 %v521, %v934
      %936 = vmatprep.mubr.bf16.mxu0 %v409
      %937 = vmatmul.mubr.bf16.gmra.mrb[0].mxu0 %v408
      %v938 = vpop.f32.mrb[0].mxu0
      %v939 = vadd.f32 %v517, %v938
      %v940 = vpop.f32.mrb[0].mxu0
      %v941 = vadd.f32 %v521, %v940
      %v942 = vpop.f32.mrb[0].mxu0
      %v943 = vadd.f32 %v517, %v942
      %v944 = vpop.f32.mrb[0].mxu0
      %v945 = vadd.f32 %v521, %v944
      %946 = vmatprep.mubr.bf16.mxu0 %v413
      %947 = vmatmul.mubr.bf16.gmra.mrb[0].mxu0 %v412
      %v948 = vpop.f32.mrb[0].mxu0
      %v949 = vadd.f32 %v517, %v948
      %v950 = vpop.f32.mrb[0].mxu0
      %v951 = vadd.f32 %v521, %v950
      %v952 = vpop.f32.mrb[0].mxu0
      %v953 = vadd.f32 %v517, %v952
      %v954 = vpop.f32.mrb[0].mxu0
      %v955 = vadd.f32 %v521, %v954
      %956 = vmatprep.mubr.bf16.mxu0 %v417
      %957 = vmatmul.mubr.bf16.gmra.mrb[0].mxu0 %v416
      %v958 = vpop.f32.mrb[0].mxu0
      %v959 = vadd.f32 %v517, %v958
      %v960 = vpop.f32.mrb[0].mxu0
      %v961 = vadd.f32 %v521, %v960
      %v962 = vpop.f32.mrb[0].mxu0
      %v963 = vadd.f32 %v517, %v962
      %v964 = vpop.f32.mrb[0].mxu0
      %v965 = vadd.f32 %v521, %v964
      %966 = vmatprep.mubr.bf16.mxu0 %v421
      %967 = vmatmul.mubr.bf16.gmra.mrb[0].mxu0 %v420
      %v968 = vpop.f32.mrb[0].mxu0
      %v969 = vadd.f32 %v517, %v968
      %v970 = vpop.f32.mrb[0].mxu0
      %v971 = vadd.f32 %v521, %v970
      %v972 = vpop.f32.mrb[0].mxu0
      %v973 = vadd.f32 %v517, %v972
      %v974 = vpop.f32.mrb[0].mxu0
      %v975 = vadd.f32 %v521, %v974
      %976 = vmatprep.mubr.bf16.mxu0 %v425
      %977 = vmatmul.mubr.bf16.gmra.mrb[0].mxu0 %v424
      %v978 = vpop.f32.mrb[0].mxu0
      %v979 = vadd.f32 %v517, %v978
      %v980 = vpop.f32.mrb[0].mxu0
      %v981 = vadd.f32 %v521, %v980
      %v982 = vpop.f32.mrb[0].mxu0
      %v983 = vadd.f32 %v517, %v982
      %v984 = vpop.f32.mrb[0].mxu0
      %v985 = vadd.f32 %v521, %v984
      %986 = vmatprep.mubr.bf16.mxu0 %v429
      %987 = vmatmul.mubr.bf16.gmra.mrb[0].mxu0 %v428
      %v988 = vpop.f32.mrb[0].mxu0
      %v989 = vadd.f32 %v517, %v988
      %v990 = vpop.f32.mrb[0].mxu0
      %v991 = vadd.f32 %v521, %v990
      %v992 = vpop.f32.mrb[0].mxu0
      %v993 = vadd.f32 %v517, %v992
      %v994 = vpop.f32.mrb[0].mxu0
      %v995 = vadd.f32 %v521, %v994
      %996 = vmatprep.mubr.bf16.mxu0 %v433
      %997 = vmatmul.mubr.bf16.gmra.mrb[0].mxu0 %v432
      %v998 = vpop.f32.mrb[0].mxu0
      %v999 = vadd.f32 %v517, %v998
      %v1000 = vpop.f32.mrb[0].mxu0
      %v1001 = vadd.f32 %v521, %v1000
      %v1002 = vpop.f32.mrb[0].mxu0
      %v1003 = vadd.f32 %v517, %v1002
      %v1004 = vpop.f32.mrb[0].mxu0
      %v1005 = vadd.f32 %v521, %v1004
      %1006 = vmatprep.mubr.bf16.mxu0 %v437
      %1007 = vmatmul.mubr.bf16.gmra.mrb[0].mxu0 %v436
      %v1008 = vpop.f32.mrb[0].mxu0
      %v1009 = vadd.f32 %v517, %v1008
      %v1010 = vpop.f32.mrb[0].mxu0
      %v1011 = vadd.f32 %v521, %v1010
      %v1012 = vpop.f32.mrb[0].mxu0
      %v1013 = vadd.f32 %v517, %v1012
      %v1014 = vpop.f32.mrb[0].mxu0
      %v1015 = vadd.f32 %v521, %v1014
      %1016 = vmatprep.mubr.bf16.mxu0 %v441
      %1017 = vmatmul.mubr.bf16.gmra.mrb[0].mxu0 %v440
      %v1018 = vpop.f32.mrb[0].mxu0
      %v1019 = vadd.f32 %v517, %v1018
      %v1020 = vpop.f32.mrb[0].mxu0
      %v1021 = vadd.f32 %v521, %v1020
      %v1022 = vpop.f32.mrb[0].mxu0
      %v1023 = vadd.f32 %v517, %v1022
      %v1024 = vpop.f32.mrb[0].mxu0
      %v1025 = vadd.f32 %v521, %v1024
      %1026 = vmatprep.mubr.bf16.mxu0 %v445
      %1027 = vmatmul.mubr.bf16.gmra.mrb[0].mxu0 %v444
      %v1028 = vpop.f32.mrb[0].mxu0
      %v1029 = vadd.f32 %v517, %v1028
      %v1030 = vpop.f32.mrb[0].mxu0
      %v1031 = vadd.f32 %v521, %v1030
      %v1032 = vpop.f32.mrb[0].mxu0
      %v1033 = vadd.f32 %v517, %v1032
      %v1034 = vpop.f32.mrb[0].mxu0
      %v1035 = vadd.f32 %v521, %v1034
      %1036 = vdwg.mxu0
      %1037 = vmatprep.subr.bf16.mxu0 %v749
      %1038 = vmatpush1.bf16.msra.mxu0 %v748
      %1039 = vmatprep.subr.bf16.mxu0 %v751
      %1040 = vmatpush1.bf16.msra.mxu0 %v750
      %1041 = vmatprep.subr.bf16.mxu0 %v753
      %1042 = vmatpush1.bf16.msra.mxu0 %v752
      %1043 = vmatprep.subr.bf16.mxu0 %v755
      %1044 = vmatpush1.bf16.msra.mxu0 %v754
      %1045 = vmatprep.subr.bf16.mxu0 %v757
      %1046 = vmatpush1.bf16.msra.mxu0 %v756
      %1047 = vmatprep.subr.bf16.mxu0 %v759
      %1048 = vmatpush1.bf16.msra.mxu0 %v758
      %1049 = vmatprep.subr.bf16.mxu0 %v761
      %1050 = vmatpush1.bf16.msra.mxu0 %v760
      %1051 = vmatprep.subr.bf16.mxu0 %v763
      %1052 = vmatpush1.bf16.msra.mxu0 %v762
      %1053 = vmatprep.subr.bf16.mxu0 %v765
      %1054 = vmatpush1.bf16.msra.mxu0 %v764
      %1055 = vmatprep.subr.bf16.mxu0 %v767
      %1056 = vmatpush1.bf16.msra.mxu0 %v766
      %1057 = vmatprep.subr.bf16.mxu0 %v769
      %1058 = vmatpush1.bf16.msra.mxu0 %v768
      %1059 = vmatprep.subr.bf16.mxu0 %v771
      %1060 = vmatpush1.bf16.msra.mxu0 %v770
      %1061 = vmatprep.subr.bf16.mxu0 %v773
      %1062 = vmatpush1.bf16.msra.mxu0 %v772
      %1063 = vmatprep.subr.bf16.mxu0 %v775
      %1064 = vmatpush1.bf16.msra.mxu0 %v774
      %1065 = vmatprep.subr.bf16.mxu0 %v777
      %1066 = vmatpush1.bf16.msra.mxu0 %v776
      %1067 = vmatprep.subr.bf16.mxu0 %v779
      %1068 = vmatpush1.bf16.msra.mxu0 %v778
      %1069 = vmatprep.mubr.bf16.mxu0 %v387
      %1070 = vmatmul.mubr.bf16.gmra.mrb[0].mxu0 %v386
      %v1071 = vpop.f32.mrb[0].mxu0
      %v1072 = vadd.f32 %v879, %v1071
      %v1073 = vpop.f32.mrb[0].mxu0
      %v1074 = vadd.f32 %v881, %v1073
      %v1075 = vpop.f32.mrb[0].mxu0
      %v1076 = vadd.f32 %v883, %v1075
      %v1077 = vpop.f32.mrb[0].mxu0
      %v1078 = vadd.f32 %v885, %v1077
      %1079 = vmatprep.mubr.bf16.mxu0 %v391
      %1080 = vmatmul.mubr.bf16.gmra.mrb[0].mxu0 %v390
      %v1081 = vpop.f32.mrb[0].mxu0
      %v1082 = vadd.f32 %v889, %v1081
      %v1083 = vpop.f32.mrb[0].mxu0
      %v1084 = vadd.f32 %v891, %v1083
      %v1085 = vpop.f32.mrb[0].mxu0
      %v1086 = vadd.f32 %v893, %v1085
      %v1087 = vpop.f32.mrb[0].mxu0
      %v1088 = vadd.f32 %v895, %v1087
      %1089 = vmatprep.mubr.bf16.mxu0 %v395
      %1090 = vmatmul.mubr.bf16.gmra.mrb[0].mxu0 %v394
      %v1091 = vpop.f32.mrb[0].mxu0
      %v1092 = vadd.f32 %v899, %v1091
      %v1093 = vpop.f32.mrb[0].mxu0
      %v1094 = vadd.f32 %v901, %v1093
      %v1095 = vpop.f32.mrb[0].mxu0
      %v1096 = vadd.f32 %v903, %v1095
      %v1097 = vpop.f32.mrb[0].mxu0
      %v1098 = vadd.f32 %v905, %v1097
      %1099 = vmatprep.mubr.bf16.mxu0 %v399
      %1100 = vmatmul.mubr.bf16.gmra.mrb[0].mxu0 %v398
      %v1101 = vpop.f32.mrb[0].mxu0
      %v1102 = vadd.f32 %v909, %v1101
      %v1103 = vpop.f32.mrb[0].mxu0
      %v1104 = vadd.f32 %v911, %v1103
      %v1105 = vpop.f32.mrb[0].mxu0
      %v1106 = vadd.f32 %v913, %v1105
      %v1107 = vpop.f32.mrb[0].mxu0
      %v1108 = vadd.f32 %v915, %v1107
      %1109 = vmatprep.mubr.bf16.mxu0 %v403
      %1110 = vmatmul.mubr.bf16.gmra.mrb[0].mxu0 %v402
      %v1111 = vpop.f32.mrb[0].mxu0
      %v1112 = vadd.f32 %v919, %v1111
      %v1113 = vpop.f32.mrb[0].mxu0
      %v1114 = vadd.f32 %v921, %v1113
      %v1115 = vpop.f32.mrb[0].mxu0
      %v1116 = vadd.f32 %v923, %v1115
      %v1117 = vpop.f32.mrb[0].mxu0
      %v1118 = vadd.f32 %v925, %v1117
      %1119 = vmatprep.mubr.bf16.mxu0 %v407
      %1120 = vmatmul.mubr.bf16.gmra.mrb[0].mxu0 %v406
      %v1121 = vpop.f32.mrb[0].mxu0
      %v1122 = vadd.f32 %v929, %v1121
      %v1123 = vpop.f32.mrb[0].mxu0
      %v1124 = vadd.f32 %v931, %v1123
      %v1125 = vpop.f32.mrb[0].mxu0
      %v1126 = vadd.f32 %v933, %v1125
      %v1127 = vpop.f32.mrb[0].mxu0
      %v1128 = vadd.f32 %v935, %v1127
      %1129 = vmatprep.mubr.bf16.mxu0 %v411
      %1130 = vmatmul.mubr.bf16.gmra.mrb[0].mxu0 %v410
      %v1131 = vpop.f32.mrb[0].mxu0
      %v1132 = vadd.f32 %v939, %v1131
      %v1133 = vpop.f32.mrb[0].mxu0
      %v1134 = vadd.f32 %v941, %v1133
      %v1135 = vpop.f32.mrb[0].mxu0
      %v1136 = vadd.f32 %v943, %v1135
      %v1137 = vpop.f32.mrb[0].mxu0
      %v1138 = vadd.f32 %v945, %v1137
      %1139 = vmatprep.mubr.bf16.mxu0 %v415
      %1140 = vmatmul.mubr.bf16.gmra.mrb[0].mxu0 %v414
      %v1141 = vpop.f32.mrb[0].mxu0
      %v1142 = vadd.f32 %v949, %v1141
      %v1143 = vpop.f32.mrb[0].mxu0
      %v1144 = vadd.f32 %v951, %v1143
      %v1145 = vpop.f32.mrb[0].mxu0
      %v1146 = vadd.f32 %v953, %v1145
      %v1147 = vpop.f32.mrb[0].mxu0
      %v1148 = vadd.f32 %v955, %v1147
      %1149 = vmatprep.mubr.bf16.mxu0 %v419
      %1150 = vmatmul.mubr.bf16.gmra.mrb[0].mxu0 %v418
      %v1151 = vpop.f32.mrb[0].mxu0
      %v1152 = vadd.f32 %v959, %v1151
      %v1153 = vpop.f32.mrb[0].mxu0
      %v1154 = vadd.f32 %v961, %v1153
      %v1155 = vpop.f32.mrb[0].mxu0
      %v1156 = vadd.f32 %v963, %v1155
      %v1157 = vpop.f32.mrb[0].mxu0
      %v1158 = vadd.f32 %v965, %v1157
      %1159 = vmatprep.mubr.bf16.mxu0 %v423
      %1160 = vmatmul.mubr.bf16.gmra.mrb[0].mxu0 %v422
      %v1161 = vpop.f32.mrb[0].mxu0
      %v1162 = vadd.f32 %v969, %v1161
      %v1163 = vpop.f32.mrb[0].mxu0
      %v1164 = vadd.f32 %v971, %v1163
      %v1165 = vpop.f32.mrb[0].mxu0
      %v1166 = vadd.f32 %v973, %v1165
      %v1167 = vpop.f32.mrb[0].mxu0
      %v1168 = vadd.f32 %v975, %v1167
      %1169 = vmatprep.mubr.bf16.mxu0 %v427
      %1170 = vmatmul.mubr.bf16.gmra.mrb[0].mxu0 %v426
      %v1171 = vpop.f32.mrb[0].mxu0
      %v1172 = vadd.f32 %v979, %v1171
      %v1173 = vpop.f32.mrb[0].mxu0
      %v1174 = vadd.f32 %v981, %v1173
      %v1175 = vpop.f32.mrb[0].mxu0
      %v1176 = vadd.f32 %v983, %v1175
      %v1177 = vpop.f32.mrb[0].mxu0
      %v1178 = vadd.f32 %v985, %v1177
      %1179 = vmatprep.mubr.bf16.mxu0 %v431
      %1180 = vmatmul.mubr.bf16.gmra.mrb[0].mxu0 %v430
      %v1181 = vpop.f32.mrb[0].mxu0
      %v1182 = vadd.f32 %v989, %v1181
      %v1183 = vpop.f32.mrb[0].mxu0
      %v1184 = vadd.f32 %v991, %v1183
      %v1185 = vpop.f32.mrb[0].mxu0
      %v1186 = vadd.f32 %v993, %v1185
      %v1187 = vpop.f32.mrb[0].mxu0
      %v1188 = vadd.f32 %v995, %v1187
      %1189 = vmatprep.mubr.bf16.mxu0 %v435
      %1190 = vmatmul.mubr.bf16.gmra.mrb[0].mxu0 %v434
      %v1191 = vpop.f32.mrb[0].mxu0
      %v1192 = vadd.f32 %v999, %v1191
      %v1193 = vpop.f32.mrb[0].mxu0
      %v1194 = vadd.f32 %v1001, %v1193
      %v1195 = vpop.f32.mrb[0].mxu0
      %v1196 = vadd.f32 %v1003, %v1195
      %v1197 = vpop.f32.mrb[0].mxu0
      %v1198 = vadd.f32 %v1005, %v1197
      %1199 = vmatprep.mubr.bf16.mxu0 %v439
      %1200 = vmatmul.mubr.bf16.gmra.mrb[0].mxu0 %v438
      %v1201 = vpop.f32.mrb[0].mxu0
      %v1202 = vadd.f32 %v1009, %v1201
      %v1203 = vpop.f32.mrb[0].mxu0
      %v1204 = vadd.f32 %v1011, %v1203
      %v1205 = vpop.f32.mrb[0].mxu0
      %v1206 = vadd.f32 %v1013, %v1205
      %v1207 = vpop.f32.mrb[0].mxu0
      %v1208 = vadd.f32 %v1015, %v1207
      %1209 = vmatprep.mubr.bf16.mxu0 %v443
      %1210 = vmatmul.mubr.bf16.gmra.mrb[0].mxu0 %v442
      %v1211 = vpop.f32.mrb[0].mxu0
      %v1212 = vadd.f32 %v1019, %v1211
      %v1213 = vpop.f32.mrb[0].mxu0
      %v1214 = vadd.f32 %v1021, %v1213
      %v1215 = vpop.f32.mrb[0].mxu0
      %v1216 = vadd.f32 %v1023, %v1215
      %v1217 = vpop.f32.mrb[0].mxu0
      %v1218 = vadd.f32 %v1025, %v1217
      %1219 = vmatprep.mubr.bf16.mxu0 %v447
      %1220 = vmatmul.mubr.bf16.gmra.mrb[0].mxu0 %v446
      %v1221 = vpop.f32.mrb[0].mxu0
      %v1222 = vadd.f32 %v1029, %v1221
      %v1223 = vpop.f32.mrb[0].mxu0
      %v1224 = vadd.f32 %v1031, %v1223
      %v1225 = vpop.f32.mrb[0].mxu0
      %v1226 = vadd.f32 %v1033, %v1225
      %v1227 = vpop.f32.mrb[0].mxu0
      %v1228 = vadd.f32 %v1035, %v1227
      %1229 = vdwg.mxu0
      %v1230 = vtanh.pop %v1072
      %v1231 = vtanh.pop %v1076
      %v1232 = vtanh.pop %v1082
      %v1233 = vtanh.pop %v1086
      %v1234 = vtanh.pop %v1092
      %v1235 = vtanh.pop %v1096
      %v1236 = vtanh.pop %v1102
      %v1237 = vtanh.pop %v1106
      %v1238 = vtanh.pop %v1112
      %v1239 = vtanh.pop %v1116
      %v1240 = vtanh.pop %v1122
      %v1241 = vtanh.pop %v1126
      %v1242 = vtanh.pop %v1132
      %v1243 = vtanh.pop %v1136
      %v1244 = vtanh.pop %v1142
      %v1245 = vtanh.pop %v1146
      %v1246 = vtanh.pop %v1152
      %v1247 = vtanh.pop %v1156
      %v1248 = vtanh.pop %v1162
      %v1249 = vtanh.pop %v1166
      %v1250 = vtanh.pop %v1172
      %v1251 = vtanh.pop %v1176
      %v1252 = vtanh.pop %v1182
      %v1253 = vtanh.pop %v1186
      %v1254 = vtanh.pop %v1192
      %v1255 = vtanh.pop %v1196
      %v1256 = vtanh.pop %v1202
      %v1257 = vtanh.pop %v1206
      %v1258 = vtanh.pop %v1212
      %v1259 = vtanh.pop %v1216
      %v1260 = vtanh.pop %v1222
      %v1261 = vtanh.pop %v1226
      %v1262 = vxor.u32 %v1074, 2147483648
      %v1263 = vxor.u32 %v1078, 2147483648
      %v1264 = vxor.u32 %v1084, 2147483648
      %v1265 = vxor.u32 %v1088, 2147483648
      %v1266 = vxor.u32 %v1094, 2147483648
      %v1267 = vxor.u32 %v1098, 2147483648
      %v1268 = vxor.u32 %v1104, 2147483648
      %v1269 = vxor.u32 %v1108, 2147483648
      %v1270 = vxor.u32 %v1114, 2147483648
      %v1271 = vxor.u32 %v1118, 2147483648
      %v1272 = vxor.u32 %v1124, 2147483648
      %v1273 = vxor.u32 %v1128, 2147483648
      %v1274 = vxor.u32 %v1134, 2147483648
      %v1275 = vxor.u32 %v1138, 2147483648
      %v1276 = vxor.u32 %v1144, 2147483648
      %v1277 = vxor.u32 %v1148, 2147483648
      %v1278 = vxor.u32 %v1154, 2147483648
      %v1279 = vxor.u32 %v1158, 2147483648
      %v1280 = vxor.u32 %v1164, 2147483648
      %v1281 = vxor.u32 %v1168, 2147483648
      %v1282 = vxor.u32 %v1174, 2147483648
      %v1283 = vxor.u32 %v1178, 2147483648
      %v1284 = vxor.u32 %v1184, 2147483648
      %v1285 = vxor.u32 %v1188, 2147483648
      %v1286 = vxor.u32 %v1194, 2147483648
      %v1287 = vxor.u32 %v1198, 2147483648
      %v1288 = vxor.u32 %v1204, 2147483648
      %v1289 = vxor.u32 %v1208, 2147483648
      %v1290 = vxor.u32 %v1214, 2147483648
      %v1291 = vxor.u32 %v1218, 2147483648
      %v1292 = vxor.u32 %v1224, 2147483648
      %v1293 = vxor.u32 %v1228, 2147483648
      %v1294 = vmul.f32 %v1262, 1.442695
      %v1295 = vpow.pop %v1294
      %v1296 = vmul.f32 %v1263, 1.442695
      %v1297 = vpow.pop %v1296
      %v1298 = vmul.f32 %v1264, 1.442695
      %v1299 = vpow.pop %v1298
      %v1300 = vmul.f32 %v1265, 1.442695
      %v1301 = vpow.pop %v1300
      %v1302 = vmul.f32 %v1266, 1.442695
      %v1303 = vpow.pop %v1302
      %v1304 = vmul.f32 %v1267, 1.442695
      %v1305 = vpow.pop %v1304
      %v1306 = vmul.f32 %v1268, 1.442695
      %v1307 = vpow.pop %v1306
      %v1308 = vmul.f32 %v1269, 1.442695
      %v1309 = vpow.pop %v1308
      %v1310 = vmul.f32 %v1270, 1.442695
      %v1311 = vpow.pop %v1310
      %v1312 = vmul.f32 %v1271, 1.442695
      %v1313 = vpow.pop %v1312
      %v1314 = vmul.f32 %v1272, 1.442695
      %v1315 = vpow.pop %v1314
      %v1316 = vmul.f32 %v1273, 1.442695
      %v1317 = vpow.pop %v1316
      %v1318 = vmul.f32 %v1274, 1.442695
      %v1319 = vpow.pop %v1318
      %v1320 = vmul.f32 %v1275, 1.442695
      %v1321 = vpow.pop %v1320
      %v1322 = vmul.f32 %v1276, 1.442695
      %v1323 = vpow.pop %v1322
      %v1324 = vmul.f32 %v1277, 1.442695
      %v1325 = vpow.pop %v1324
      %v1326 = vmul.f32 %v1278, 1.442695
      %v1327 = vpow.pop %v1326
      %v1328 = vmul.f32 %v1279, 1.442695
      %v1329 = vpow.pop %v1328
      %v1330 = vmul.f32 %v1280, 1.442695
      %v1331 = vpow.pop %v1330
      %v1332 = vmul.f32 %v1281, 1.442695
      %v1333 = vpow.pop %v1332
      %v1334 = vmul.f32 %v1282, 1.442695
      %v1335 = vpow.pop %v1334
      %v1336 = vmul.f32 %v1283, 1.442695
      %v1337 = vpow.pop %v1336
      %v1338 = vmul.f32 %v1284, 1.442695
      %v1339 = vpow.pop %v1338
      %v1340 = vmul.f32 %v1285, 1.442695
      %v1341 = vpow.pop %v1340
      %v1342 = vmul.f32 %v1286, 1.442695
      %v1343 = vpow.pop %v1342
      %v1344 = vmul.f32 %v1287, 1.442695
      %v1345 = vpow.pop %v1344
      %v1346 = vmul.f32 %v1288, 1.442695
      %v1347 = vpow.pop %v1346
      %v1348 = vmul.f32 %v1289, 1.442695
      %v1349 = vpow.pop %v1348
      %v1350 = vmul.f32 %v1290, 1.442695
      %v1351 = vpow.pop %v1350
      %v1352 = vmul.f32 %v1291, 1.442695
      %v1353 = vpow.pop %v1352
      %v1354 = vmul.f32 %v1292, 1.442695
      %v1355 = vpow.pop %v1354
      %v1356 = vmul.f32 %v1293, 1.442695
      %v1357 = vpow.pop %v1356
      %v1358 = vadd.f32 %v1295, 1.0
      %v1359 = vadd.f32 %v1297, 1.0
      %v1360 = vadd.f32 %v1299, 1.0
      %v1361 = vadd.f32 %v1301, 1.0
      %v1362 = vadd.f32 %v1303, 1.0
      %v1363 = vadd.f32 %v1305, 1.0
      %v1364 = vadd.f32 %v1307, 1.0
      %v1365 = vadd.f32 %v1309, 1.0
      %v1366 = vadd.f32 %v1311, 1.0
      %v1367 = vadd.f32 %v1313, 1.0
      %v1368 = vadd.f32 %v1315, 1.0
      %v1369 = vadd.f32 %v1317, 1.0
      %v1370 = vadd.f32 %v1319, 1.0
      %v1371 = vadd.f32 %v1321, 1.0
      %v1372 = vadd.f32 %v1323, 1.0
      %v1373 = vadd.f32 %v1325, 1.0
      %v1374 = vadd.f32 %v1327, 1.0
      %v1375 = vadd.f32 %v1329, 1.0
      %v1376 = vadd.f32 %v1331, 1.0
      %v1377 = vadd.f32 %v1333, 1.0
      %v1378 = vadd.f32 %v1335, 1.0
      %v1379 = vadd.f32 %v1337, 1.0
      %v1380 = vadd.f32 %v1339, 1.0
      %v1381 = vadd.f32 %v1341, 1.0
      %v1382 = vadd.f32 %v1343, 1.0
      %v1383 = vadd.f32 %v1345, 1.0
      %v1384 = vadd.f32 %v1347, 1.0
      %v1385 = vadd.f32 %v1349, 1.0
      %v1386 = vadd.f32 %v1351, 1.0
      %v1387 = vadd.f32 %v1353, 1.0
      %v1388 = vadd.f32 %v1355, 1.0
      %v1389 = vadd.f32 %v1357, 1.0
      %v1390 = vrcp.pop %v1358
      %v1391 = vmul.f32 1.0, %v1390
      %v1392 = vrcp.pop %v1359
      %v1393 = vmul.f32 1.0, %v1392
      %v1394 = vrcp.pop %v1360
      %v1395 = vmul.f32 1.0, %v1394
      %v1396 = vrcp.pop %v1361
      %v1397 = vmul.f32 1.0, %v1396
      %v1398 = vrcp.pop %v1362
      %v1399 = vmul.f32 1.0, %v1398
      %v1400 = vrcp.pop %v1363
      %v1401 = vmul.f32 1.0, %v1400
      %v1402 = vrcp.pop %v1364
      %v1403 = vmul.f32 1.0, %v1402
      %v1404 = vrcp.pop %v1365
      %v1405 = vmul.f32 1.0, %v1404
      %v1406 = vrcp.pop %v1366
      %v1407 = vmul.f32 1.0, %v1406
      %v1408 = vrcp.pop %v1367
      %v1409 = vmul.f32 1.0, %v1408
      %v1410 = vrcp.pop %v1368
      %v1411 = vmul.f32 1.0, %v1410
      %v1412 = vrcp.pop %v1369
      %v1413 = vmul.f32 1.0, %v1412
      %v1414 = vrcp.pop %v1370
      %v1415 = vmul.f32 1.0, %v1414
      %v1416 = vrcp.pop %v1371
      %v1417 = vmul.f32 1.0, %v1416
      %v1418 = vrcp.pop %v1372
      %v1419 = vmul.f32 1.0, %v1418
      %v1420 = vrcp.pop %v1373
      %v1421 = vmul.f32 1.0, %v1420
      %v1422 = vrcp.pop %v1374
      %v1423 = vmul.f32 1.0, %v1422
      %v1424 = vrcp.pop %v1375
      %v1425 = vmul.f32 1.0, %v1424
      %v1426 = vrcp.pop %v1376
      %v1427 = vmul.f32 1.0, %v1426
      %v1428 = vrcp.pop %v1377
      %v1429 = vmul.f32 1.0, %v1428
      %v1430 = vrcp.pop %v1378
      %v1431 = vmul.f32 1.0, %v1430
      %v1432 = vrcp.pop %v1379
      %v1433 = vmul.f32 1.0, %v1432
      %v1434 = vrcp.pop %v1380
      %v1435 = vmul.f32 1.0, %v1434
      %v1436 = vrcp.pop %v1381
      %v1437 = vmul.f32 1.0, %v1436
      %v1438 = vrcp.pop %v1382
      %v1439 = vmul.f32 1.0, %v1438
      %v1440 = vrcp.pop %v1383
      %v1441 = vmul.f32 1.0, %v1440
      %v1442 = vrcp.pop %v1384
      %v1443 = vmul.f32 1.0, %v1442
      %v1444 = vrcp.pop %v1385
      %v1445 = vmul.f32 1.0, %v1444
      %v1446 = vrcp.pop %v1386
      %v1447 = vmul.f32 1.0, %v1446
      %v1448 = vrcp.pop %v1387
      %v1449 = vmul.f32 1.0, %v1448
      %v1450 = vrcp.pop %v1388
      %v1451 = vmul.f32 1.0, %v1450
      %v1452 = vrcp.pop %v1389
      %v1453 = vmul.f32 1.0, %v1452
      %v1454 = vmul.f32 %v1230, %v1391
      %v1455 = vmul.f32 %v1231, %v1393
      %v1456 = vmul.f32 %v1232, %v1395
      %v1457 = vmul.f32 %v1233, %v1397
      %v1458 = vmul.f32 %v1234, %v1399
      %v1459 = vmul.f32 %v1235, %v1401
      %v1460 = vmul.f32 %v1236, %v1403
      %v1461 = vmul.f32 %v1237, %v1405
      %v1462 = vmul.f32 %v1238, %v1407
      %v1463 = vmul.f32 %v1239, %v1409
      %v1464 = vmul.f32 %v1240, %v1411
      %v1465 = vmul.f32 %v1241, %v1413
      %v1466 = vmul.f32 %v1242, %v1415
      %v1467 = vmul.f32 %v1243, %v1417
      %v1468 = vmul.f32 %v1244, %v1419
      %v1469 = vmul.f32 %v1245, %v1421
      %v1470 = vmul.f32 %v1246, %v1423
      %v1471 = vmul.f32 %v1247, %v1425
      %v1472 = vmul.f32 %v1248, %v1427
      %v1473 = vmul.f32 %v1249, %v1429
      %v1474 = vmul.f32 %v1250, %v1431
      %v1475 = vmul.f32 %v1251, %v1433
      %v1476 = vmul.f32 %v1252, %v1435
      %v1477 = vmul.f32 %v1253, %v1437
      %v1478 = vmul.f32 %v1254, %v1439
      %v1479 = vmul.f32 %v1255, %v1441
      %v1480 = vmul.f32 %v1256, %v1443
      %v1481 = vmul.f32 %v1257, %v1445
      %v1482 = vmul.f32 %v1258, %v1447
      %v1483 = vmul.f32 %v1259, %v1449
      %v1484 = vmul.f32 %v1260, %v1451
      %v1485 = vmul.f32 %v1261, %v1453
      %v1486 = vld [vmem:[%s3] sm:$0x1]
      %v1487 = vld [vmem:[#allocation2] sm:$0x1]
      %1489 = vset.pattern.permute.xlu0 0
      %1490 = vperm.xlu0 %1489, %v1487
      %v1491 = vpop.permute.xlu0 %1490
      %v1493 = vlaneseq
      %v1494 = vshrl.u32 %v1493, 7
      %v1495 = vsub.s32 0, %v1494
      %v1496 = vrot.slane %v1491, %v1495
      %1497 = vmatprep.subr.mxu0 0.0
      %1498 = vmatpush1.xpose.msra.mxu0 %v1454
      %1499 = vmatprep.subr.mxu0 0.0
      %1500 = vmatpush1.xpose.msra.mxu0 %v1455
      %1501 = vmatprep.subr.mxu0 0.0
      %1502 = vmatpush1.xpose.msra.mxu0 %v1456
      %1503 = vmatprep.subr.mxu0 0.0
      %1504 = vmatpush1.xpose.msra.mxu0 %v1457
      %1505 = vmatprep.subr.mxu0 0.0
      %1506 = vmatpush1.xpose.msra.mxu0 %v1458
      %1507 = vmatprep.subr.mxu0 0.0
      %1508 = vmatpush1.xpose.msra.mxu0 %v1459
      %1509 = vmatprep.subr.mxu0 0.0
      %1510 = vmatpush1.xpose.msra.mxu0 %v1460
      %1511 = vmatprep.subr.mxu0 0.0
      %1512 = vmatpush1.xpose.msra.mxu0 %v1461
      %1513 = vmatprep.subr.mxu0 0.0
      %1514 = vmatpush1.xpose.msra.mxu0 %v1462
      %1515 = vmatprep.subr.mxu0 0.0
      %1516 = vmatpush1.xpose.msra.mxu0 %v1463
      %1517 = vmatprep.subr.mxu0 0.0
      %1518 = vmatpush1.xpose.msra.mxu0 %v1464
      %1519 = vmatprep.subr.mxu0 0.0
      %1520 = vmatpush1.xpose.msra.mxu0 %v1465
      %1521 = vmatprep.subr.mxu0 0.0
      %1522 = vmatpush1.xpose.msra.mxu0 %v1466
      %1523 = vmatprep.subr.mxu0 0.0
      %1524 = vmatpush1.xpose.msra.mxu0 %v1467
      %1525 = vmatprep.subr.mxu0 0.0
      %1526 = vmatpush1.xpose.msra.mxu0 %v1468
      %1527 = vmatprep.subr.mxu0 0.0
      %1528 = vmatpush1.xpose.msra.mxu0 %v1469
      %1529 = vmatprep.subr.mxu0 0.0
      %1530 = vmatpush1.xpose.msra.mxu0 %v1470
      %1531 = vmatprep.subr.mxu0 0.0
      %1532 = vmatpush1.xpose.msra.mxu0 %v1471
      %1533 = vmatprep.subr.mxu0 0.0
      %1534 = vmatpush1.xpose.msra.mxu0 %v1472
      %1535 = vmatprep.subr.mxu0 0.0
      %1536 = vmatpush1.xpose.msra.mxu0 %v1473
      %1537 = vmatprep.subr.mxu0 0.0
      %1538 = vmatpush1.xpose.msra.mxu0 %v1474
      %1539 = vmatprep.subr.mxu0 0.0
      %1540 = vmatpush1.xpose.msra.mxu0 %v1475
      %1541 = vmatprep.subr.mxu0 0.0
      %1542 = vmatpush1.xpose.msra.mxu0 %v1476
      %1543 = vmatprep.subr.mxu0 0.0
      %1544 = vmatpush1.xpose.msra.mxu0 %v1477
      %1545 = vmatprep.subr.mxu0 0.0
      %1546 = vmatpush1.xpose.msra.mxu0 %v1478
      %1547 = vmatprep.subr.mxu0 0.0
      %1548 = vmatpush1.xpose.msra.mxu0 %v1479
      %1549 = vmatprep.subr.mxu0 0.0
      %1550 = vmatpush1.xpose.msra.mxu0 %v1480
      %1551 = vmatprep.subr.mxu0 0.0
      %1552 = vmatpush1.xpose.msra.mxu0 %v1481
      %1553 = vmatprep.subr.mxu0 0.0
      %1554 = vmatpush1.xpose.msra.mxu0 %v1482
      %1555 = vmatprep.subr.mxu0 0.0
      %1556 = vmatpush1.xpose.msra.mxu0 %v1483
      %1557 = vmatprep.subr.mxu0 0.0
      %1558 = vmatpush1.xpose.msra.mxu0 %v1484
      %1559 = vmatprep.subr.mxu0 0.0
      %1560 = vmatpush1.xpose.msra.mxu0 %v1485
      %1561 = vmatprep.mubr.f32.mxu0 0.0
      %1562 = vmatmul.mubr.f32.gmra.mrb[0].mxu0 %v1486
      %v1563 = vpop.f32.mrb[0].mxu0
      %v1564 = vadd.f32 %v1496, %v1563
      %v1565 = vpop.f32.mrb[0].mxu0
      %v1566 = vadd.f32 %v1496, %v1565
      %1567 = vdwg.mxu0
      %v1570 = vcombine.low %v1564, %v1566
      %v1572 = vunpack.c.l.s4 1966171168
      %v1573 = vunpack.c.0.s8 %v1572
      %v1574 = vlaneseq
      %v1575 = vshrl.u32 %v1574, 7
      %v1576 = vsub.s32 %v1573, %v1575
      %v1577 = vrot.slane %v1570, %v1576
      %v1579 = vunpack.c.l.s4 1966171168
      %v1580 = vunpack.c.0.s8 %v1579
      %v1581 = vlaneseq
      %v1582 = vshrl.u32 %v1581, 7
      %v1583 = vsub.s32 %v1580, %v1582
      %v1584 = vrot.slane %v1577, %v1583
      %v1586 = vlaneseq
      %vm1587 = vcmp.ge.s32.totalorder %v1586, 0
      %vm1588 = vcmp.lt.s32.totalorder %v1586, 256
      %vm1589 = vmand %vm1587, %vm1588
      %1590 = vst.msk [vmem:[%s254] sm:$0x3] %vm1589, %v1584
      %s1591 = smul.u32 2, %s18
      %p1592 = scmp.lt.s32.totalorder %s1591, 3
      %s1593 = scalar_select %p1592, %s1591, 3
      %s1594 = scalar_lea.vmem %s5, %s1593
      // Predicated region
      $region41: #{attention_gated.1} parent=39 // pred_check
        %p1595 = pneg %p146
      $region42: #{attention_gated.1} parent=39 // pred_check_branch
        %1597 = sbr.rel (%p1595) target = $region44
      $region43: #{attention_gated.1} parent=39 // pred_region
        %s1598 = smul.u32 2, %s18
      $region44: #{attention_gated.1} parent=39 // pred_fallthru
        _
    $region40: #{attention_gated.1} parent=5 // pred_fallthru
      _
    %p1599 = scmp.le.s32.totalorder 2, %s13
    // Predicated region
    $region45: #{attention_gated.1} parent=5 // pred_check
      %p1600 = pneg %p1599
    $region46: #{attention_gated.1} parent=5 // pred_check_branch
      %1602 = sbr.rel (%p1600) target = $region48
    $region47: #{attention_gated.1} parent=5 // pred_region
      %s1603 = ssub.s32 %s13, 2
      // Predicated region
      $region49: #{attention_gated.1} parent=47 // pred_check
        %p1604 = pneg %p152
      $region50: #{attention_gated.1} parent=47 // pred_check_branch
        %1606 = sbr.rel (%p1604) target = $region52
      $region51: #{attention_gated.1} parent=47 // pred_region
        %s1607 = smul.u32 2, %s19
        %p1608 = scmp.lt.s32.totalorder %s1607, 3
        %s1609 = scalar_select %p1608, %s1607, 3
        %s1610 = scalar_lea.vmem %s5, %s1609
      $region52: #{attention_gated.1} parent=47 // pred_fallthru
        _
    $region48: #{attention_gated.1} parent=5 // pred_fallthru
      _
  $region6: #{attention_gated.1} parent=0 // loop_footer
    %s17 = sadd.s32 1, %s13
  $region7: #{attention_gated.1} parent=0 // loop_footer_branch
    %12 = sbr.rel target = $region3
  $region8: #{attention_gated.1} parent=0 // loop_exit
    _

</llo_original>
